<compile_context>
chip_gen: v7x
topology: tpu7x:2x2x1
jax: 0.10.0
libtpu: 0.0.40
codegen_flags: <defaults>
</compile_context>

<pallas_src>
import jax
import jax.numpy as jnp
from jax.experimental import pallas as pl
from jax.experimental.pallas import tpu as pltpu

BN_EPS = 1e-5


def _round_up(x, m):
    return (x + m - 1) // m * m


def _tucker_kernel(lhs_ref, rel_ref, w_ref, wb_ref, bn1_ref, out_ref, acc_ref):
    # lhs_ref : (TB, de)           bf16  (bn0 scale already folded into w_ref)
    # rel_ref : (1, TB, RC)        bf16  r-chunk of relation embeddings
    # w_ref   : (RC, de, de_pad)   bf16  bn0-scaled core-tensor chunk (streamed)
    # wb_ref  : (RC, de_pad)       bf16  bn0-shift bias Wb[r,j] = sum_i t0[i] W[r,i,j]
    # bn1_ref : (2, de_pad)        f32   rows = [scale, shift] (padded lanes zero)
    # out_ref : (TB, de_pad)       f32
    # acc_ref : (TB, de_pad)       f32   accumulator, resident across r-chunks
    k = pl.program_id(1)

    @pl.when(k == 0)
    def _():
        acc_ref[...] = jnp.zeros_like(acc_ref)

    x = lhs_ref[...]                       # (TB, de)  bf16
    rel = rel_ref[0]                       # (TB, RC)  bf16
    rc = rel.shape[1]

    # bn0-shift contribution for this chunk: rel_chunk @ Wb_chunk  (tiny K = RC)
    acc = acc_ref[...] + jnp.dot(rel, wb_ref[...],
                                 preferred_element_type=jnp.float32)

    # Per-r partial MXU matmuls; the (TB, RC*de) outer product is never built.
    for r in range(rc):                    # RC is small and static -> unrolled
        xr = x * rel[:, r:r + 1]           # (TB, de) bf16 broadcast multiply
        acc = acc + jnp.dot(xr, w_ref[r],
                            preferred_element_type=jnp.float32)
    acc_ref[...] = acc

    @pl.when(k == pl.num_programs(1) - 1)
    def _():
        y = acc_ref[...] * bn1_ref[0] + bn1_ref[1]     # folded bn1 epilogue
        out_ref[...] = y.astype(out_ref.dtype)


def _fold_bn(params):
    gamma, beta, mean, var = params
    scale = gamma * jax.lax.rsqrt(var + BN_EPS)
    shift = beta - mean * scale
    return scale, shift


def tucker_forward(lhs, rel, w_core, bn0_params, bn1_params, *,
                   block_b=256, block_r=16, matmul_dtype=jnp.bfloat16):
    """TuckER forward (eval mode).

    lhs        : (B, de)      float32 subject-entity embeddings
    rel        : (B, dr)      float32 relation embeddings
    w_core     : (dr, de, de) float32 core tensor
    bn*_params : (4, de)      rows = [gamma, beta, running_mean, running_var]
    returns    : (B, de)      float32
    """
    B, de = lhs.shape
    dr = rel.shape[1]
    assert w_core.shape == (dr, de, de)

    de_pad = _round_up(de, 128)                  # lane-dense output slab

    # --- fold BatchNorms into scale/shift (loop-invariant, host/XLA side) ---
    s0, t0 = _fold_bn(bn0_params)
    s1, t1 = _fold_bn(bn1_params)
    bn1_ss = jnp.zeros((2, de_pad), jnp.float32)
    bn1_ss = bn1_ss.at[:, :de].set(jnp.stack([s1, t1], axis=0))

    # --- r-chunking (reduction axis of the grid) -----------------------------
    rc = _round_up(min(block_r, dr), 8)
    dr_pad = _round_up(dr, rc)
    n_rc = dr_pad // rc

    # --- core tensor: fold bn0 scale, pad, bf16 ------------------------------
    w_scaled = (w_core * s0[None, :, None]).astype(matmul_dtype)
    w3 = jnp.zeros((dr_pad, de, de_pad), matmul_dtype)
    w3 = w3.at[:dr, :, :de].set(w_scaled)
    # bn0 shift folded as a per-relation bias matrix Wb[r,j] = sum_i t0[i] W[r,i,j]
    wb = jnp.einsum("i,rij->rj", t0, w_core)
    wb_p = jnp.zeros((dr_pad, de_pad), matmul_dtype)
    wb_p = wb_p.at[:dr, :de].set(wb.astype(matmul_dtype))

    # --- batch tiling: multiples of 16 rows (bf16 sublane packing) -----------
    b16 = _round_up(B, 16)
    tb = min(_round_up(block_b, 16), b16)
    if tb == b16 and b16 >= 64:
        # ensure >=2 "parallel" batch steps so megacore / v7x's 2 TCs can shard
        tb = _round_up(b16 // 2, 16)
    b_pad = _round_up(b16, tb)
    n_b = b_pad // tb

    lhs_p = jnp.zeros((b_pad, de), matmul_dtype).at[:B].set(lhs.astype(matmul_dtype))
    rel_p = jnp.zeros((b_pad, dr_pad), matmul_dtype).at[:B, :dr].set(rel.astype(matmul_dtype))
    # (n_rc, b_pad, rc): chunk axis leading so each block's trailing dims are full
    rel3 = jnp.transpose(rel_p.reshape(b_pad, n_rc, rc), (1, 0, 2))

    # --- VMEM budget: explicit and clamped to physical VMEM ------------------
    bf = jnp.dtype(matmul_dtype).itemsize
    vmem_need = (
        2 * tb * _round_up(de, 128) * bf            # lhs tiles (double-buffered)
        + 2 * tb * _round_up(rc, 128) * bf          # rel tiles
        + 2 * rc * _round_up(de, 8) * de_pad * bf   # streamed W chunks
        + 2 * _round_up(rc, 8) * de_pad * bf        # streamed Wb chunks
        + 2 * 8 * de_pad * 4                        # bn1 scale/shift
        + 2 * tb * de_pad * 4                       # out tiles
        + tb * de_pad * 4                           # acc scratch
        + 6 * tb * de_pad * 4                       # in-kernel intermediates headroom
    )
    try:
        vmem_cap = int(pltpu.get_tpu_info().vmem_capacity_bytes)
    except Exception:
        vmem_cap = 64 << 20                          # conservative (v7x physical)
    vmem_limit = int(min(max(2 * vmem_need, 16 << 20), vmem_cap * 7 // 8))

    out = pl.pallas_call(
        _tucker_kernel,
        out_shape=jax.ShapeDtypeStruct((b_pad, de_pad), jnp.float32),
        grid_spec=pltpu.PrefetchScalarGridSpec(
            num_scalar_prefetch=0,
            grid=(n_b, n_rc),                        # reduction (r-chunk) axis last
            in_specs=[
                pl.BlockSpec((tb, de), lambda i, k: (i, 0)),
                pl.BlockSpec((1, tb, rc), lambda i, k: (k, i, 0)),
                pl.BlockSpec((rc, de, de_pad), lambda i, k: (k, 0, 0)),
                pl.BlockSpec((rc, de_pad), lambda i, k: (k, 0)),
                pl.BlockSpec((2, de_pad), lambda i, k: (0, 0)),
            ],
            out_specs=pl.BlockSpec((tb, de_pad), lambda i, k: (i, 0)),
            scratch_shapes=[pltpu.VMEM((tb, de_pad), jnp.float32)],
        ),
        compiler_params=pltpu.CompilerParams(
            dimension_semantics=("parallel", "arbitrary"),
            vmem_limit_bytes=vmem_limit,
        ),
    )(lhs_p, rel3, w3, wb_p, bn1_ss)

    return out[:B, :de]


# ---------------- pure-JAX reference (mirrors the PyTorch forward, eval mode) ----
def tucker_reference(lhs, rel, w_core, bn0_params, bn1_params):
    de = lhs.shape[1]
    dr = rel.shape[1]
    g0, b0, m0, v0 = bn0_params
    g1, b1, m1, v1 = bn1_params
    x = (lhs - m0) / jnp.sqrt(v0 + BN_EPS) * g0 + b0
    w_mat = (rel @ w_core.reshape(dr, de * de)).reshape(-1, de, de)
    y = jnp.einsum("bi,bij->bj", x, w_mat)
    y = (y - m1) / jnp.sqrt(v1 + BN_EPS) * g1 + b1
    return y


if __name__ == "__main__":
    # Small, deterministic synthetic setup consistent with TuckER.__init__.
    num_ents, num_rels = 50, 10
    de, dr = 32, 16          # dim_ent_embedding, dim_rel_embedding
    B = 8                    # batch

    key = jax.random.PRNGKey(0)
    k_e, k_r, k_w, k_bn, k_idx = jax.random.split(key, 5)

    # Embedding tables (xavier_normal_-style scale).
    E = jax.random.normal(k_e, (num_ents, de), jnp.float32) * (2.0 / (num_ents + de)) ** 0.5
    R = jax.random.normal(k_r, (num_rels, dr), jnp.float32) * (2.0 / (num_rels + dr)) ** 0.5
    # Core tensor W ~ Uniform(-1, 1), shape (dr, de, de).
    W = jax.random.uniform(k_w, (dr, de, de), jnp.float32, minval=-1.0, maxval=1.0)

    # BatchNorm params [gamma, beta, running_mean, running_var], nonzero to exercise math.
    kb0, kb1 = jax.random.split(k_bn)

    def make_bn(k):
        k1, k2, k3, k4 = jax.random.split(k, 4)
        gamma = jax.random.uniform(k1, (de,), jnp.float32, 0.5, 1.5)
        beta = jax.random.normal(k2, (de,), jnp.float32) * 0.1
        mean = jax.random.normal(k3, (de,), jnp.float32) * 0.1
        var = jax.random.uniform(k4, (de,), jnp.float32, 0.5, 1.5)
        return jnp.stack([gamma, beta, mean, var], axis=0)   # (4, de)

    bn0_params = make_bn(kb0)
    bn1_params = make_bn(kb1)

    # Batch of (lhs, rel) embedding lookups (glue, plain JAX).
    ki1, ki2 = jax.random.split(k_idx)
    ent_idx = jax.random.randint(ki1, (B,), 0, num_ents)
    rel_idx = jax.random.randint(ki2, (B,), 0, num_rels)
    lhs = E[ent_idx]          # (B, de)
    rel = R[rel_idx]          # (B, dr)

    out = tucker_forward(lhs, rel, W, bn0_params, bn1_params)
    out = jax.block_until_ready(out)

    ref = tucker_reference(lhs, rel, W, bn0_params, bn1_params)
    assert out.shape == (B, de)
    # bf16 MXU operands with f32 accumulation -> bf16-level tolerance vs f32 reference.
    assert jnp.allclose(out, ref, atol=5e-2, rtol=5e-2), "mismatch vs reference"

    print("KERNEL_OK")
</pallas_src>

<mosaic_0001>
module attributes {stable_mosaic.version = 11 : i64} {
  func.func @_tucker_kernel(%arg0: i32, %arg1: i32, %arg2: memref<16x32xbf16, #tpu.memory_space<vmem>>, %arg3: memref<1x16x16xbf16, #tpu.memory_space<vmem>>, %arg4: memref<16x32x128xbf16, #tpu.memory_space<vmem>>, %arg5: memref<16x128xbf16, #tpu.memory_space<vmem>>, %arg6: memref<2x128xf32, #tpu.memory_space<vmem>>, %arg7: memref<16x128xf32, #tpu.memory_space<vmem>>, %arg8: memref<16x128xf32, #tpu.memory_space<vmem>>) attributes {dimension_semantics = [#tpu.dimension_semantics<parallel>, #tpu.dimension_semantics<arbitrary>], iteration_bounds = array<i64: 1, 1>, scalar_prefetch = 0 : i64, scratch_operands = 1 : i64, tpu.core_type = #tpu.core_type<tc>, window_params = [{transform_indices = @transform_0, window_bounds = array<i64: 16, 32>}, {transform_indices = @transform_1, window_bounds = array<i64: 1, 16, 16>}, {transform_indices = @transform_2, window_bounds = array<i64: 16, 32, 128>}, {transform_indices = @transform_3, window_bounds = array<i64: 16, 128>}, {pipeline_mode = #tpu.pipeline_mode<synchronous>, transform_indices = @transform_4, window_bounds = array<i64: 2, 128>}, {transform_indices = @transform_5, window_bounds = array<i64: 16, 128>}]} {
    %c0_i32 = arith.constant 0 : i32
    %0 = arith.cmpi eq, %arg1, %c0_i32 : i32
    %1 = arith.extui %0 : i1 to i32
    %c0_i32_0 = arith.constant 0 : i32
    %2 = arith.cmpi ne, %1, %c0_i32_0 : i32
    scf.if %2 {
      %cst_62 = arith.constant 0.000000e+00 : f32
      %126 = vector.broadcast %cst_62 : f32 to vector<16x128xf32>
      %c0_63 = arith.constant 0 : index
      %c0_64 = arith.constant 0 : index
      %127 = vector.load %arg8[%c0_63, %c0_64] : memref<16x128xf32, #tpu.memory_space<vmem>>, vector<16x128xf32>
      tpu.vector_store %arg8[%c0_63, %c0_64], %126 {strides = array<i32>} : memref<16x128xf32, #tpu.memory_space<vmem>>, vector<16x128xf32>,
    } else {
    }
    %c0 = arith.constant 0 : index
    %c0_1 = arith.constant 0 : index
    %3 = vector.load %arg2[%c0, %c0_1] : memref<16x32xbf16, #tpu.memory_space<vmem>>, vector<16x32xbf16>
    %c0_2 = arith.constant 0 : index
    %c0_3 = arith.constant 0 : index
    %c0_4 = arith.constant 0 : index
    %4 = vector.load %arg3[%c0_2, %c0_3, %c0_4] : memref<1x16x16xbf16, #tpu.memory_space<vmem>>, vector<1x16x16xbf16>
    %5 = vector.shape_cast %4 : vector<1x16x16xbf16> to vector<16x16xbf16>
    %c0_5 = arith.constant 0 : index
    %c0_6 = arith.constant 0 : index
    %6 = vector.load %arg8[%c0_5, %c0_6] : memref<16x128xf32, #tpu.memory_space<vmem>>, vector<16x128xf32>
    %c0_7 = arith.constant 0 : index
    %c0_8 = arith.constant 0 : index
    %7 = vector.load %arg5[%c0_7, %c0_8] : memref<16x128xbf16, #tpu.memory_space<vmem>>, vector<16x128xbf16>
    %cst = arith.constant dense<0.000000e+00> : vector<16x128xf32>
    %8 = tpu.matmul %5, %7, %cst {dimension_numbers = #tpu.dot_dimension_numbers<[1], [0], [0], [1], [0, 0, 1, 1], [], []>} : vector<16x16xbf16>, vector<16x128xbf16>, vector<16x128xf32> -> vector<16x128xf32>
    %9 = arith.addf %6, %8 : vector<16x128xf32>
    %10 = vector.extract_strided_slice %5 {offsets = [0, 0], sizes = [16, 1], strides = [1, 1]} : vector<16x16xbf16> to vector<16x1xbf16>
    %11 = vector.broadcast %10 : vector<16x1xbf16> to vector<16x32xbf16>
    %12 = arith.mulf %3, %11 : vector<16x32xbf16>
    %c0_9 = arith.constant 0 : index
    %c0_10 = arith.constant 0 : index
    %c0_11 = arith.constant 0 : index
    %13 = vector.load %arg4[%c0_9, %c0_10, %c0_11] : memref<16x32x128xbf16, #tpu.memory_space<vmem>>, vector<1x32x128xbf16>
    %14 = vector.shape_cast %13 : vector<1x32x128xbf16> to vector<32x128xbf16>
    %cst_12 = arith.constant dense<0.000000e+00> : vector<16x128xf32>
    %15 = tpu.matmul %12, %14, %cst_12 {dimension_numbers = #tpu.dot_dimension_numbers<[1], [0], [0], [1], [0, 0, 1, 1], [], []>} : vector<16x32xbf16>, vector<32x128xbf16>, vector<16x128xf32> -> vector<16x128xf32>
    %16 = arith.addf %9, %15 : vector<16x128xf32>
    %17 = vector.extract_strided_slice %5 {offsets = [0, 1], sizes = [16, 1], strides = [1, 1]} : vector<16x16xbf16> to vector<16x1xbf16>
    %18 = vector.broadcast %17 : vector<16x1xbf16> to vector<16x32xbf16>
    %19 = arith.mulf %3, %18 : vector<16x32xbf16>
    %c1 = arith.constant 1 : index
    %c0_13 = arith.constant 0 : index
    %c0_14 = arith.constant 0 : index
    %20 = vector.load %arg4[%c1, %c0_13, %c0_14] : memref<16x32x128xbf16, #tpu.memory_space<vmem>>, vector<1x32x128xbf16>
    %21 = vector.shape_cast %20 : vector<1x32x128xbf16> to vector<32x128xbf16>
    %cst_15 = arith.constant dense<0.000000e+00> : vector<16x128xf32>
    %22 = tpu.matmul %19, %21, %cst_15 {dimension_numbers = #tpu.dot_dimension_numbers<[1], [0], [0], [1], [0, 0, 1, 1], [], []>} : vector<16x32xbf16>, vector<32x128xbf16>, vector<16x128xf32> -> vector<16x128xf32>
    %23 = arith.addf %16, %22 : vector<16x128xf32>
    %24 = vector.extract_strided_slice %5 {offsets = [0, 2], sizes = [16, 1], strides = [1, 1]} : vector<16x16xbf16> to vector<16x1xbf16>
    %25 = vector.broadcast %24 : vector<16x1xbf16> to vector<16x32xbf16>
    %26 = arith.mulf %3, %25 : vector<16x32xbf16>
    %c2 = arith.constant 2 : index
    %c0_16 = arith.constant 0 : index
    %c0_17 = arith.constant 0 : index
    %27 = vector.load %arg4[%c2, %c0_16, %c0_17] : memref<16x32x128xbf16, #tpu.memory_space<vmem>>, vector<1x32x128xbf16>
    %28 = vector.shape_cast %27 : vector<1x32x128xbf16> to vector<32x128xbf16>
    %cst_18 = arith.constant dense<0.000000e+00> : vector<16x128xf32>
    %29 = tpu.matmul %26, %28, %cst_18 {dimension_numbers = #tpu.dot_dimension_numbers<[1], [0], [0], [1], [0, 0, 1, 1], [], []>} : vector<16x32xbf16>, vector<32x128xbf16>, vector<16x128xf32> -> vector<16x128xf32>
    %30 = arith.addf %23, %29 : vector<16x128xf32>
    %31 = vector.extract_strided_slice %5 {offsets = [0, 3], sizes = [16, 1], strides = [1, 1]} : vector<16x16xbf16> to vector<16x1xbf16>
    %32 = vector.broadcast %31 : vector<16x1xbf16> to vector<16x32xbf16>
    %33 = arith.mulf %3, %32 : vector<16x32xbf16>
    %c3 = arith.constant 3 : index
    %c0_19 = arith.constant 0 : index
    %c0_20 = arith.constant 0 : index
    %34 = vector.load %arg4[%c3, %c0_19, %c0_20] : memref<16x32x128xbf16, #tpu.memory_space<vmem>>, vector<1x32x128xbf16>
    %35 = vector.shape_cast %34 : vector<1x32x128xbf16> to vector<32x128xbf16>
    %cst_21 = arith.constant dense<0.000000e+00> : vector<16x128xf32>
    %36 = tpu.matmul %33, %35, %cst_21 {dimension_numbers = #tpu.dot_dimension_numbers<[1], [0], [0], [1], [0, 0, 1, 1], [], []>} : vector<16x32xbf16>, vector<32x128xbf16>, vector<16x128xf32> -> vector<16x128xf32>
    %37 = arith.addf %30, %36 : vector<16x128xf32>
    %38 = vector.extract_strided_slice %5 {offsets = [0, 4], sizes = [16, 1], strides = [1, 1]} : vector<16x16xbf16> to vector<16x1xbf16>
    %39 = vector.broadcast %38 : vector<16x1xbf16> to vector<16x32xbf16>
    %40 = arith.mulf %3, %39 : vector<16x32xbf16>
    %c4 = arith.constant 4 : index
    %c0_22 = arith.constant 0 : index
    %c0_23 = arith.constant 0 : index
    %41 = vector.load %arg4[%c4, %c0_22, %c0_23] : memref<16x32x128xbf16, #tpu.memory_space<vmem>>, vector<1x32x128xbf16>
    %42 = vector.shape_cast %41 : vector<1x32x128xbf16> to vector<32x128xbf16>
    %cst_24 = arith.constant dense<0.000000e+00> : vector<16x128xf32>
    %43 = tpu.matmul %40, %42, %cst_24 {dimension_numbers = #tpu.dot_dimension_numbers<[1], [0], [0], [1], [0, 0, 1, 1], [], []>} : vector<16x32xbf16>, vector<32x128xbf16>, vector<16x128xf32> -> vector<16x128xf32>
    %44 = arith.addf %37, %43 : vector<16x128xf32>
    %45 = vector.extract_strided_slice %5 {offsets = [0, 5], sizes = [16, 1], strides = [1, 1]} : vector<16x16xbf16> to vector<16x1xbf16>
    %46 = vector.broadcast %45 : vector<16x1xbf16> to vector<16x32xbf16>
    %47 = arith.mulf %3, %46 : vector<16x32xbf16>
    %c5 = arith.constant 5 : index
    %c0_25 = arith.constant 0 : index
    %c0_26 = arith.constant 0 : index
    %48 = vector.load %arg4[%c5, %c0_25, %c0_26] : memref<16x32x128xbf16, #tpu.memory_space<vmem>>, vector<1x32x128xbf16>
    %49 = vector.shape_cast %48 : vector<1x32x128xbf16> to vector<32x128xbf16>
    %cst_27 = arith.constant dense<0.000000e+00> : vector<16x128xf32>
    %50 = tpu.matmul %47, %49, %cst_27 {dimension_numbers = #tpu.dot_dimension_numbers<[1], [0], [0], [1], [0, 0, 1, 1], [], []>} : vector<16x32xbf16>, vector<32x128xbf16>, vector<16x128xf32> -> vector<16x128xf32>
    %51 = arith.addf %44, %50 : vector<16x128xf32>
    %52 = vector.extract_strided_slice %5 {offsets = [0, 6], sizes = [16, 1], strides = [1, 1]} : vector<16x16xbf16> to vector<16x1xbf16>
    %53 = vector.broadcast %52 : vector<16x1xbf16> to vector<16x32xbf16>
    %54 = arith.mulf %3, %53 : vector<16x32xbf16>
    %c6 = arith.constant 6 : index
    %c0_28 = arith.constant 0 : index
    %c0_29 = arith.constant 0 : index
    %55 = vector.load %arg4[%c6, %c0_28, %c0_29] : memref<16x32x128xbf16, #tpu.memory_space<vmem>>, vector<1x32x128xbf16>
    %56 = vector.shape_cast %55 : vector<1x32x128xbf16> to vector<32x128xbf16>
    %cst_30 = arith.constant dense<0.000000e+00> : vector<16x128xf32>
    %57 = tpu.matmul %54, %56, %cst_30 {dimension_numbers = #tpu.dot_dimension_numbers<[1], [0], [0], [1], [0, 0, 1, 1], [], []>} : vector<16x32xbf16>, vector<32x128xbf16>, vector<16x128xf32> -> vector<16x128xf32>
    %58 = arith.addf %51, %57 : vector<16x128xf32>
    %59 = vector.extract_strided_slice %5 {offsets = [0, 7], sizes = [16, 1], strides = [1, 1]} : vector<16x16xbf16> to vector<16x1xbf16>
    %60 = vector.broadcast %59 : vector<16x1xbf16> to vector<16x32xbf16>
    %61 = arith.mulf %3, %60 : vector<16x32xbf16>
    %c7 = arith.constant 7 : index
    %c0_31 = arith.constant 0 : index
    %c0_32 = arith.constant 0 : index
    %62 = vector.load %arg4[%c7, %c0_31, %c0_32] : memref<16x32x128xbf16, #tpu.memory_space<vmem>>, vector<1x32x128xbf16>
    %63 = vector.shape_cast %62 : vector<1x32x128xbf16> to vector<32x128xbf16>
    %cst_33 = arith.constant dense<0.000000e+00> : vector<16x128xf32>
    %64 = tpu.matmul %61, %63, %cst_33 {dimension_numbers = #tpu.dot_dimension_numbers<[1], [0], [0], [1], [0, 0, 1, 1], [], []>} : vector<16x32xbf16>, vector<32x128xbf16>, vector<16x128xf32> -> vector<16x128xf32>
    %65 = arith.addf %58, %64 : vector<16x128xf32>
    %66 = vector.extract_strided_slice %5 {offsets = [0, 8], sizes = [16, 1], strides = [1, 1]} : vector<16x16xbf16> to vector<16x1xbf16>
    %67 = vector.broadcast %66 : vector<16x1xbf16> to vector<16x32xbf16>
    %68 = arith.mulf %3, %67 : vector<16x32xbf16>
    %c8 = arith.constant 8 : index
    %c0_34 = arith.constant 0 : index
    %c0_35 = arith.constant 0 : index
    %69 = vector.load %arg4[%c8, %c0_34, %c0_35] : memref<16x32x128xbf16, #tpu.memory_space<vmem>>, vector<1x32x128xbf16>
    %70 = vector.shape_cast %69 : vector<1x32x128xbf16> to vector<32x128xbf16>
    %cst_36 = arith.constant dense<0.000000e+00> : vector<16x128xf32>
    %71 = tpu.matmul %68, %70, %cst_36 {dimension_numbers = #tpu.dot_dimension_numbers<[1], [0], [0], [1], [0, 0, 1, 1], [], []>} : vector<16x32xbf16>, vector<32x128xbf16>, vector<16x128xf32> -> vector<16x128xf32>
    %72 = arith.addf %65, %71 : vector<16x128xf32>
    %73 = vector.extract_strided_slice %5 {offsets = [0, 9], sizes = [16, 1], strides = [1, 1]} : vector<16x16xbf16> to vector<16x1xbf16>
    %74 = vector.broadcast %73 : vector<16x1xbf16> to vector<16x32xbf16>
    %75 = arith.mulf %3, %74 : vector<16x32xbf16>
    %c9 = arith.constant 9 : index
    %c0_37 = arith.constant 0 : index
    %c0_38 = arith.constant 0 : index
    %76 = vector.load %arg4[%c9, %c0_37, %c0_38] : memref<16x32x128xbf16, #tpu.memory_space<vmem>>, vector<1x32x128xbf16>
    %77 = vector.shape_cast %76 : vector<1x32x128xbf16> to vector<32x128xbf16>
    %cst_39 = arith.constant dense<0.000000e+00> : vector<16x128xf32>
    %78 = tpu.matmul %75, %77, %cst_39 {dimension_numbers = #tpu.dot_dimension_numbers<[1], [0], [0], [1], [0, 0, 1, 1], [], []>} : vector<16x32xbf16>, vector<32x128xbf16>, vector<16x128xf32> -> vector<16x128xf32>
    %79 = arith.addf %72, %78 : vector<16x128xf32>
    %80 = vector.extract_strided_slice %5 {offsets = [0, 10], sizes = [16, 1], strides = [1, 1]} : vector<16x16xbf16> to vector<16x1xbf16>
    %81 = vector.broadcast %80 : vector<16x1xbf16> to vector<16x32xbf16>
    %82 = arith.mulf %3, %81 : vector<16x32xbf16>
    %c10 = arith.constant 10 : index
    %c0_40 = arith.constant 0 : index
    %c0_41 = arith.constant 0 : index
    %83 = vector.load %arg4[%c10, %c0_40, %c0_41] : memref<16x32x128xbf16, #tpu.memory_space<vmem>>, vector<1x32x128xbf16>
    %84 = vector.shape_cast %83 : vector<1x32x128xbf16> to vector<32x128xbf16>
    %cst_42 = arith.constant dense<0.000000e+00> : vector<16x128xf32>
    %85 = tpu.matmul %82, %84, %cst_42 {dimension_numbers = #tpu.dot_dimension_numbers<[1], [0], [0], [1], [0, 0, 1, 1], [], []>} : vector<16x32xbf16>, vector<32x128xbf16>, vector<16x128xf32> -> vector<16x128xf32>
    %86 = arith.addf %79, %85 : vector<16x128xf32>
    %87 = vector.extract_strided_slice %5 {offsets = [0, 11], sizes = [16, 1], strides = [1, 1]} : vector<16x16xbf16> to vector<16x1xbf16>
    %88 = vector.broadcast %87 : vector<16x1xbf16> to vector<16x32xbf16>
    %89 = arith.mulf %3, %88 : vector<16x32xbf16>
    %c11 = arith.constant 11 : index
    %c0_43 = arith.constant 0 : index
    %c0_44 = arith.constant 0 : index
    %90 = vector.load %arg4[%c11, %c0_43, %c0_44] : memref<16x32x128xbf16, #tpu.memory_space<vmem>>, vector<1x32x128xbf16>
    %91 = vector.shape_cast %90 : vector<1x32x128xbf16> to vector<32x128xbf16>
    %cst_45 = arith.constant dense<0.000000e+00> : vector<16x128xf32>
    %92 = tpu.matmul %89, %91, %cst_45 {dimension_numbers = #tpu.dot_dimension_numbers<[1], [0], [0], [1], [0, 0, 1, 1], [], []>} : vector<16x32xbf16>, vector<32x128xbf16>, vector<16x128xf32> -> vector<16x128xf32>
    %93 = arith.addf %86, %92 : vector<16x128xf32>
    %94 = vector.extract_strided_slice %5 {offsets = [0, 12], sizes = [16, 1], strides = [1, 1]} : vector<16x16xbf16> to vector<16x1xbf16>
    %95 = vector.broadcast %94 : vector<16x1xbf16> to vector<16x32xbf16>
    %96 = arith.mulf %3, %95 : vector<16x32xbf16>
    %c12 = arith.constant 12 : index
    %c0_46 = arith.constant 0 : index
    %c0_47 = arith.constant 0 : index
    %97 = vector.load %arg4[%c12, %c0_46, %c0_47] : memref<16x32x128xbf16, #tpu.memory_space<vmem>>, vector<1x32x128xbf16>
    %98 = vector.shape_cast %97 : vector<1x32x128xbf16> to vector<32x128xbf16>
    %cst_48 = arith.constant dense<0.000000e+00> : vector<16x128xf32>
    %99 = tpu.matmul %96, %98, %cst_48 {dimension_numbers = #tpu.dot_dimension_numbers<[1], [0], [0], [1], [0, 0, 1, 1], [], []>} : vector<16x32xbf16>, vector<32x128xbf16>, vector<16x128xf32> -> vector<16x128xf32>
    %100 = arith.addf %93, %99 : vector<16x128xf32>
    %101 = vector.extract_strided_slice %5 {offsets = [0, 13], sizes = [16, 1], strides = [1, 1]} : vector<16x16xbf16> to vector<16x1xbf16>
    %102 = vector.broadcast %101 : vector<16x1xbf16> to vector<16x32xbf16>
    %103 = arith.mulf %3, %102 : vector<16x32xbf16>
    %c13 = arith.constant 13 : index
    %c0_49 = arith.constant 0 : index
    %c0_50 = arith.constant 0 : index
    %104 = vector.load %arg4[%c13, %c0_49, %c0_50] : memref<16x32x128xbf16, #tpu.memory_space<vmem>>, vector<1x32x128xbf16>
    %105 = vector.shape_cast %104 : vector<1x32x128xbf16> to vector<32x128xbf16>
    %cst_51 = arith.constant dense<0.000000e+00> : vector<16x128xf32>
    %106 = tpu.matmul %103, %105, %cst_51 {dimension_numbers = #tpu.dot_dimension_numbers<[1], [0], [0], [1], [0, 0, 1, 1], [], []>} : vector<16x32xbf16>, vector<32x128xbf16>, vector<16x128xf32> -> vector<16x128xf32>
    %107 = arith.addf %100, %106 : vector<16x128xf32>
    %108 = vector.extract_strided_slice %5 {offsets = [0, 14], sizes = [16, 1], strides = [1, 1]} : vector<16x16xbf16> to vector<16x1xbf16>
    %109 = vector.broadcast %108 : vector<16x1xbf16> to vector<16x32xbf16>
    %110 = arith.mulf %3, %109 : vector<16x32xbf16>
    %c14 = arith.constant 14 : index
    %c0_52 = arith.constant 0 : index
    %c0_53 = arith.constant 0 : index
    %111 = vector.load %arg4[%c14, %c0_52, %c0_53] : memref<16x32x128xbf16, #tpu.memory_space<vmem>>, vector<1x32x128xbf16>
    %112 = vector.shape_cast %111 : vector<1x32x128xbf16> to vector<32x128xbf16>
    %cst_54 = arith.constant dense<0.000000e+00> : vector<16x128xf32>
    %113 = tpu.matmul %110, %112, %cst_54 {dimension_numbers = #tpu.dot_dimension_numbers<[1], [0], [0], [1], [0, 0, 1, 1], [], []>} : vector<16x32xbf16>, vector<32x128xbf16>, vector<16x128xf32> -> vector<16x128xf32>
    %114 = arith.addf %107, %113 : vector<16x128xf32>
    %115 = vector.extract_strided_slice %5 {offsets = [0, 15], sizes = [16, 1], strides = [1, 1]} : vector<16x16xbf16> to vector<16x1xbf16>
    %116 = vector.broadcast %115 : vector<16x1xbf16> to vector<16x32xbf16>
    %117 = arith.mulf %3, %116 : vector<16x32xbf16>
    %c15 = arith.constant 15 : index
    %c0_55 = arith.constant 0 : index
    %c0_56 = arith.constant 0 : index
    %118 = vector.load %arg4[%c15, %c0_55, %c0_56] : memref<16x32x128xbf16, #tpu.memory_space<vmem>>, vector<1x32x128xbf16>
    %119 = vector.shape_cast %118 : vector<1x32x128xbf16> to vector<32x128xbf16>
    %cst_57 = arith.constant dense<0.000000e+00> : vector<16x128xf32>
    %120 = tpu.matmul %117, %119, %cst_57 {dimension_numbers = #tpu.dot_dimension_numbers<[1], [0], [0], [1], [0, 0, 1, 1], [], []>} : vector<16x32xbf16>, vector<32x128xbf16>, vector<16x128xf32> -> vector<16x128xf32>
    %121 = arith.addf %114, %120 : vector<16x128xf32>
    %c0_58 = arith.constant 0 : index
    %c0_59 = arith.constant 0 : index
    %122 = vector.load %arg8[%c0_58, %c0_59] : memref<16x128xf32, #tpu.memory_space<vmem>>, vector<16x128xf32>
    tpu.vector_store %arg8[%c0_58, %c0_59], %121 {strides = array<i32>} : memref<16x128xf32, #tpu.memory_space<vmem>>, vector<16x128xf32>,
    %c0_i32_60 = arith.constant 0 : i32
    %123 = arith.cmpi eq, %arg1, %c0_i32_60 : i32
    %124 = arith.extui %123 : i1 to i32
    %c0_i32_61 = arith.constant 0 : i32
    %125 = arith.cmpi ne, %124, %c0_i32_61 : i32
    scf.if %125 {
      %c0_62 = arith.constant 0 : index
      %c0_63 = arith.constant 0 : index
      %126 = vector.load %arg8[%c0_62, %c0_63] : memref<16x128xf32, #tpu.memory_space<vmem>>, vector<16x128xf32>
      %c0_64 = arith.constant 0 : index
      %c0_65 = arith.constant 0 : index
      %127 = vector.load %arg6[%c0_64, %c0_65] : memref<2x128xf32, #tpu.memory_space<vmem>>, vector<1x128xf32>
      %128 = vector.shape_cast %127 : vector<1x128xf32> to vector<128xf32>
      %129 = vector.shape_cast %128 : vector<128xf32> to vector<1x128xf32>
      %130 = vector.broadcast %129 : vector<1x128xf32> to vector<16x128xf32>
      %131 = arith.mulf %126, %130 : vector<16x128xf32>
      %c1_66 = arith.constant 1 : index
      %c0_67 = arith.constant 0 : index
      %132 = vector.load %arg6[%c1_66, %c0_67] : memref<2x128xf32, #tpu.memory_space<vmem>>, vector<1x128xf32>
      %133 = vector.shape_cast %132 : vector<1x128xf32> to vector<128xf32>
      %134 = vector.shape_cast %133 : vector<128xf32> to vector<1x128xf32>
      %135 = vector.broadcast %134 : vector<1x128xf32> to vector<16x128xf32>
      %136 = arith.addf %131, %135 : vector<16x128xf32>
      %c0_68 = arith.constant 0 : index
      %c0_69 = arith.constant 0 : index
      %137 = vector.load %arg7[%c0_68, %c0_69] : memref<16x128xf32, #tpu.memory_space<vmem>>, vector<16x128xf32>
      tpu.vector_store %arg7[%c0_68, %c0_69], %136 {strides = array<i32>} : memref<16x128xf32, #tpu.memory_space<vmem>>, vector<16x128xf32>,
    } else {
    }
    return
  }
  func.func @transform_0(%arg0: i32, %arg1: i32) -> (i32, i32) {
    %c0_i32 = arith.constant 0 : i32
    %c0_i32_0 = arith.constant 0 : i32
    return %arg0, %c0_i32 : i32, i32
  }
  func.func @transform_1(%arg0: i32, %arg1: i32) -> (i32, i32, i32) {
    %c0_i32 = arith.constant 0 : i32
    %c0_i32_0 = arith.constant 0 : i32
    return %arg1, %arg0, %c0_i32 : i32, i32, i32
  }
  func.func @transform_2(%arg0: i32, %arg1: i32) -> (i32, i32, i32) {
    %c0_i32 = arith.constant 0 : i32
    %c0_i32_0 = arith.constant 0 : i32
    %c0_i32_1 = arith.constant 0 : i32
    return %arg1, %c0_i32, %c0_i32_0 : i32, i32, i32
  }
  func.func @transform_3(%arg0: i32, %arg1: i32) -> (i32, i32) {
    %c0_i32 = arith.constant 0 : i32
    %c0_i32_0 = arith.constant 0 : i32
    return %arg1, %c0_i32 : i32, i32
  }
  func.func @transform_4(%arg0: i32, %arg1: i32) -> (i32, i32) {
    %c0_i32 = arith.constant 0 : i32
    %c0_i32_0 = arith.constant 0 : i32
    %c0_i32_1 = arith.constant 0 : i32
    return %c0_i32, %c0_i32_0 : i32, i32
  }
  func.func @transform_5(%arg0: i32, %arg1: i32) -> (i32, i32) {
    %c0_i32 = arith.constant 0 : i32
    %c0_i32_0 = arith.constant 0 : i32
    return %arg0, %c0_i32 : i32, i32
  }
}

</mosaic_0001>

<llo_original>
// kernel: tpu_custom_call.1
$region0: #{tpu_custom_call.1}
  #allocation0 [shape = 'u32[]', space=smem, size = 0x4, offset = 0x4, fixed_abs, tag = 'smem constant byte address 0x4 - core index']
  #allocation1 [shape = 'u32[144,128]{1,0:T(1,128)}', space=vmem, size = 0x12000, scoped, tag = 'internal scratch']
  #allocation2 [shape = 'f32[16,128]{1,0:T(8,128)}', space=vmem, size = 0x2000, scoped, tag = 'scratch operand']
  %s0 = inlined_call_operand.hbm [shape: bf16[16,32], index: 0, kind: input, shape index: {}]
  %s1 = inlined_call_operand.hbm [shape: bf16[1,16,16], index: 1, kind: input, shape index: {}]
  %s2 = inlined_call_operand.hbm [shape: bf16[16,32,128], index: 2, kind: input, shape index: {}]
  %s3 = inlined_call_operand.vmem [shape: bf16[16,128], index: 3, kind: input, shape index: {}]
  %s4 = inlined_call_operand.vmem [shape: f32[2,128], index: 4, kind: input, shape index: {}]
  %s5 = inlined_call_operand.hbm [shape: f32[16,128], index: 5, kind: output, shape index: {}]
  %s6 = sld [smem:[#allocation0]]
  $region50: #{tpu_custom_call.1} parent=0
    _
  %s8 = ssub.s32 1, %s6
  %s9 = scalar_select 0, %s8, %s6
  $region1: #{tpu_custom_call.1} parent=0
    #allocation3 [shape = 'u8[4096]{0}', space=vmem, size = 0x1000, scoped, tag = 'input window, operand 0, single buffered']
    #allocation4 [shape = 's32[1]{0}', space=sflag, size = 0x4, scoped, tag = 'scoped memory for tpu_custom_call.1']
    #allocation5 [shape = 's32[1]{0}', space=sflag, size = 0x4, scoped, tag = 'scoped memory for tpu_custom_call.1']
    #allocation6 [shape = 'u8[4096]{0}', space=vmem, size = 0x1000, scoped, tag = 'input window, operand 1, single buffered']
    #allocation7 [shape = 's32[1]{0}', space=sflag, size = 0x4, scoped, tag = 'scoped memory for tpu_custom_call.1']
    #allocation8 [shape = 'u8[131072]{0}', space=vmem, size = 0x20000, scoped, tag = 'input window, operand 2, single buffered']
    #allocation9 [shape = 'u8[8192]{0}', space=vmem, size = 0x2000, scoped, tag = 'output window, operand 0, single buffered']
    %10 = vsyncpa [#allocation4], 0
    %11 = vsyncpa [#allocation7], 0
    %12 = vsyncpa [#allocation5], 0
    // Predicated region
    $region2: #{tpu_custom_call.1} parent=1 // pred_check
      _
    $region3: #{tpu_custom_call.1} parent=1 // pred_check_branch
      %14 = sbr.rel (0) target = $region5
    $region4: #{tpu_custom_call.1} parent=1 // pred_region
      %s16 = ssub.s32 128, 128
      %17 = vsyncadd [#allocation4], %s16
      %s18 = sshll.u32 [#allocation3], 4
      %s19 = int_to_ptr.vmem [resolvable:$true] %s18
      %24 = dma.hbm_to_vmem [thread:$0]  %s0, 128, %s19, [#allocation4], 64, 64, 4
    $region5: #{tpu_custom_call.1} parent=1 // pred_fallthru
      _
    // Predicated region
    $region6: #{tpu_custom_call.1} parent=1 // pred_check
      _
    $region7: #{tpu_custom_call.1} parent=1 // pred_check_branch
      %26 = sbr.rel (0) target = $region9
    $region8: #{tpu_custom_call.1} parent=1 // pred_region
      %s28 = ssub.s32 128, 128
      %29 = vsyncadd [#allocation7], %s28
      %s30 = sshll.u32 [#allocation6], 4
      %s31 = int_to_ptr.vmem [resolvable:$true] %s30
      %36 = dma.hbm_to_vmem [thread:$0]  %s1, 128, %s31, [#allocation7], 64, 64, 4
    $region9: #{tpu_custom_call.1} parent=1 // pred_fallthru
      _
    // Predicated region
    $region10: #{tpu_custom_call.1} parent=1 // pred_check
      _
    $region11: #{tpu_custom_call.1} parent=1 // pred_check_branch
      %38 = sbr.rel (0) target = $region13
    $region12: #{tpu_custom_call.1} parent=1 // pred_region
      %s40 = ssub.s32 4096, 4096
      %41 = vsyncadd [#allocation7], %s40
      %s42 = sshll.u32 [#allocation8], 4
      %s43 = int_to_ptr.vmem [resolvable:$true] %s42
      %48 = dma.hbm_to_vmem [thread:$0]  %s2, 4096, %s43, [#allocation7], 64, 64, 4
    $region13: #{tpu_custom_call.1} parent=1 // pred_fallthru
      _
    // Predicated region
    $region14: #{tpu_custom_call.1} parent=1 // pred_check
      _
    $region15: #{tpu_custom_call.1} parent=1 // pred_check_branch
      %50 = sbr.rel (0) target = $region17
    $region16: #{tpu_custom_call.1} parent=1 // pred_region
      _
    $region17: #{tpu_custom_call.1} parent=1 // pred_fallthru
      _
    // Predicated region
    $region18: #{tpu_custom_call.1} parent=1 // pred_check
      _
    $region19: #{tpu_custom_call.1} parent=1 // pred_check_branch
      %52 = sbr.rel (0) target = $region21
    $region20: #{tpu_custom_call.1} parent=1 // pred_region
      _
    $region21: #{tpu_custom_call.1} parent=1 // pred_fallthru
      _
    // Predicated region
    $region22: #{tpu_custom_call.1} parent=1 // pred_check
      _
    $region23: #{tpu_custom_call.1} parent=1 // pred_check_branch
      %54 = sbr.rel (0) target = $region25
    $region24: #{tpu_custom_call.1} parent=1 // pred_region
      %55 = dma.done [#allocation4], 128
    $region25: #{tpu_custom_call.1} parent=1 // pred_fallthru
      _
    // Predicated region
    $region26: #{tpu_custom_call.1} parent=1 // pred_check
      _
    $region27: #{tpu_custom_call.1} parent=1 // pred_check_branch
      %57 = sbr.rel (0) target = $region29
    $region28: #{tpu_custom_call.1} parent=1 // pred_region
      %58 = dma.done [#allocation7], 128
    $region29: #{tpu_custom_call.1} parent=1 // pred_fallthru
      _
    // Predicated region
    $region30: #{tpu_custom_call.1} parent=1 // pred_check
      _
    $region31: #{tpu_custom_call.1} parent=1 // pred_check_branch
      %60 = sbr.rel (0) target = $region33
    $region32: #{tpu_custom_call.1} parent=1 // pred_region
      %61 = dma.done [#allocation7], 4096
    $region33: #{tpu_custom_call.1} parent=1 // pred_fallthru
      _
    %p63 = scmp.eq.s32.totalorder 0, 0
    // Predicated region
    $region34: #{tpu_custom_call.1} parent=1 // pred_check
      %p64 = pneg %p63
    $region35: #{tpu_custom_call.1} parent=1 // pred_check_branch
      %66 = sbr.rel (%p64) target = $region37
    $region36: #{tpu_custom_call.1} parent=1 // pred_region
      %67 = vst [vmem:[#allocation2] sm:$0xff] 0.0
      %68 = vst [vmem:[#allocation2 + $0x8] sm:$0xff] 0.0
    $region37: #{tpu_custom_call.1} parent=1 // pred_fallthru
      _
    %v69 = vld [vmem:[#allocation3] sm:$0xf]
    %v70 = vld [vmem:[#allocation3 + $0x4] sm:$0xf]
    %v71 = vld [vmem:[#allocation6] sm:$0xf]
    %v72 = vld [vmem:[#allocation6 + $0x4] sm:$0xf]
    %v73 = vld [vmem:[#allocation2] sm:$0xff]
    %v74 = vld [vmem:[#allocation2 + $0x8] sm:$0xff]
    %v75 = vld [vmem:[%s3] sm:$0xf]
    %v76 = vld [vmem:[%s3 + $0x4] sm:$0xf]
    %v79 = vunpack.c.l.b16 %v71
    %v80 = vunpack.c.l.b16 %v72
    %v81 = vpack.c.b16 %v80, %v79
    %v84 = vunpack.c.l.b16 %v75
    %v85 = vunpack.c.l.b16 %v76
    %v86 = vpack.c.b16 %v85, %v84
    %vm88 = vcmask 130048
    %v90 = vsel %vm88, %v81, 0
    %92 = vmatprep.subr.bf16.mxu0 0
    %93 = vmatpush1.bf16.msra.mxu0 %v86
    %94 = vmatprep.subr.bf16.mxu0 0
    %95 = vmatpush1.bf16.msra.mxu0 0
    %96 = vmatprep.subr.bf16.mxu0 0
    %97 = vmatpush1.bf16.msra.mxu0 0
    %98 = vmatprep.subr.bf16.mxu0 0
    %99 = vmatpush1.bf16.msra.mxu0 0
    %100 = vmatprep.subr.bf16.mxu0 0
    %101 = vmatpush1.bf16.msra.mxu0 0
    %102 = vmatprep.subr.bf16.mxu0 0
    %103 = vmatpush1.bf16.msra.mxu0 0
    %104 = vmatprep.subr.bf16.mxu0 0
    %105 = vmatpush1.bf16.msra.mxu0 0
    %106 = vmatprep.subr.bf16.mxu0 0
    %107 = vmatpush1.bf16.msra.mxu0 0
    %108 = vmatprep.subr.bf16.mxu0 0
    %109 = vmatpush1.bf16.msra.mxu0 0
    %110 = vmatprep.subr.bf16.mxu0 0
    %111 = vmatpush1.bf16.msra.mxu0 0
    %112 = vmatprep.subr.bf16.mxu0 0
    %113 = vmatpush1.bf16.msra.mxu0 0
    %114 = vmatprep.subr.bf16.mxu0 0
    %115 = vmatpush1.bf16.msra.mxu0 0
    %116 = vmatprep.subr.bf16.mxu0 0
    %117 = vmatpush1.bf16.msra.mxu0 0
    %118 = vmatprep.subr.bf16.mxu0 0
    %119 = vmatpush1.bf16.msra.mxu0 0
    %120 = vmatprep.subr.bf16.mxu0 0
    %121 = vmatpush1.bf16.msra.mxu0 0
    %122 = vmatprep.subr.bf16.mxu0 0
    %123 = vmatpush1.bf16.msra.mxu0 0
    %124 = vmatprep.mubr.bf16.mxu0 0
    %125 = vmatmul.mubr.bf16.gmra.mrb[0].mxu0 %v90
    %v126 = vpop.f32.mrb[0].mxu0
    %v127 = vadd.f32 0.0, %v126
    %v128 = vpop.f32.mrb[0].mxu0
    %v129 = vpop.f32.mrb[0].mxu0
    %v130 = vadd.f32 0.0, %v129
    %v131 = vpop.f32.mrb[0].mxu0
    %132 = vdwg.mxu0
    %v133 = vadd.f32 %v73, %v127
    %v134 = vadd.f32 %v74, %v130
    %136 = vset.pattern.permute.xlu0 0
    %137 = vperm.xlu0 %136, %v71
    %v138 = vpop.permute.xlu0 %137
    %v141 = vunpack.c.l.s4 839922192
    %v142 = vunpack.c.0.s8 %v141
    %v143 = vlaneseq
    %v144 = vshrl.u32 %v143, 7
    %v145 = vsub.s32 %v142, %v144
    %v146 = vrot.slane %v138, %v145
    %148 = vset.pattern.permute.xlu0 0
    %149 = vperm.xlu0 %148, %v72
    %v150 = vpop.permute.xlu0 %149
    %v153 = vunpack.c.l.s4 839922192
    %v154 = vunpack.c.0.s8 %v153
    %v155 = vlaneseq
    %v156 = vshrl.u32 %v155, 7
    %v157 = vsub.s32 %v154, %v156
    %v158 = vrot.slane %v150, %v157
    %v159 = vmul.bf16 %v69, %v146
    %v160 = vmul.bf16 %v70, %v158
    %v161 = vld [vmem:[#allocation8] sm:$0xf]
    %v162 = vld [vmem:[#allocation8 + $0x4] sm:$0xf]
    %v163 = vld [vmem:[#allocation8 + $0x8] sm:$0xf]
    %v164 = vld [vmem:[#allocation8 + $0xc] sm:$0xf]
    %v167 = vunpack.c.l.b16 %v159
    %v168 = vunpack.c.l.b16 %v160
    %v169 = vpack.c.b16 %v168, %v167
    %v174 = vunpack.c.l.b16 %v161
    %v175 = vunpack.c.l.b16 %v162
    %v176 = vunpack.c.l.b16 %v163
    %v177 = vunpack.c.l.b16 %v164
    %v178 = vpack.c.b16 %v175, %v174
    %v179 = vpack.c.b16 %v177, %v176
    %vm182 = vcmask 261120
    %v184 = vsel %vm182, %v169, 0
    %186 = vmatprep.subr.bf16.mxu0 0
    %187 = vmatpush1.bf16.msra.mxu0 %v178
    %188 = vmatprep.subr.bf16.mxu0 0
    %189 = vmatpush1.bf16.msra.mxu0 %v179
    %190 = vmatprep.subr.bf16.mxu0 0
    %191 = vmatpush1.bf16.msra.mxu0 0
    %192 = vmatprep.subr.bf16.mxu0 0
    %193 = vmatpush1.bf16.msra.mxu0 0
    %194 = vmatprep.subr.bf16.mxu0 0
    %195 = vmatpush1.bf16.msra.mxu0 0
    %196 = vmatprep.subr.bf16.mxu0 0
    %197 = vmatpush1.bf16.msra.mxu0 0
    %198 = vmatprep.subr.bf16.mxu0 0
    %199 = vmatpush1.bf16.msra.mxu0 0
    %200 = vmatprep.subr.bf16.mxu0 0
    %201 = vmatpush1.bf16.msra.mxu0 0
    %202 = vmatprep.subr.bf16.mxu0 0
    %203 = vmatpush1.bf16.msra.mxu0 0
    %204 = vmatprep.subr.bf16.mxu0 0
    %205 = vmatpush1.bf16.msra.mxu0 0
    %206 = vmatprep.subr.bf16.mxu0 0
    %207 = vmatpush1.bf16.msra.mxu0 0
    %208 = vmatprep.subr.bf16.mxu0 0
    %209 = vmatpush1.bf16.msra.mxu0 0
    %210 = vmatprep.subr.bf16.mxu0 0
    %211 = vmatpush1.bf16.msra.mxu0 0
    %212 = vmatprep.subr.bf16.mxu0 0
    %213 = vmatpush1.bf16.msra.mxu0 0
    %214 = vmatprep.subr.bf16.mxu0 0
    %215 = vmatpush1.bf16.msra.mxu0 0
    %216 = vmatprep.subr.bf16.mxu0 0
    %217 = vmatpush1.bf16.msra.mxu0 0
    %218 = vmatprep.mubr.bf16.mxu0 0
    %219 = vmatmul.mubr.bf16.gmra.mrb[0].mxu0 %v184
    %v220 = vpop.f32.mrb[0].mxu0
    %v221 = vadd.f32 0.0, %v220
    %v222 = vpop.f32.mrb[0].mxu0
    %v223 = vpop.f32.mrb[0].mxu0
    %v224 = vadd.f32 0.0, %v223
    %v225 = vpop.f32.mrb[0].mxu0
    %226 = vdwg.mxu0
    %v227 = vadd.f32 %v133, %v221
    %v228 = vadd.f32 %v134, %v224
    %229 = vset.pattern.permute.xlu0 1
    %230 = vperm.xlu0 %229, %v71
    %v231 = vpop.permute.xlu0 %230
    %v234 = vunpack.c.l.s4 839922192
    %v235 = vunpack.c.0.s8 %v234
    %v236 = vlaneseq
    %v237 = vshrl.u32 %v236, 7
    %v238 = vsub.s32 %v235, %v237
    %v239 = vrot.slane %v231, %v238
    %240 = vset.pattern.permute.xlu0 1
    %241 = vperm.xlu0 %240, %v72
    %v242 = vpop.permute.xlu0 %241
    %v245 = vunpack.c.l.s4 839922192
    %v246 = vunpack.c.0.s8 %v245
    %v247 = vlaneseq
    %v248 = vshrl.u32 %v247, 7
    %v249 = vsub.s32 %v246, %v248
    %v250 = vrot.slane %v242, %v249
    %v251 = vmul.bf16 %v69, %v239
    %v252 = vmul.bf16 %v70, %v250
    %s253 = scalar_lea.vmem [#allocation8], 16
    %v254 = vld [vmem:[%s253] sm:$0xf]
    %v255 = vld [vmem:[%s253 + $0x4] sm:$0xf]
    %v256 = vld [vmem:[%s253 + $0x8] sm:$0xf]
    %v257 = vld [vmem:[%s253 + $0xc] sm:$0xf]
    %v260 = vunpack.c.l.b16 %v251
    %v261 = vunpack.c.l.b16 %v252
    %v262 = vpack.c.b16 %v261, %v260
    %v267 = vunpack.c.l.b16 %v254
    %v268 = vunpack.c.l.b16 %v255
    %v269 = vunpack.c.l.b16 %v256
    %v270 = vunpack.c.l.b16 %v257
    %v271 = vpack.c.b16 %v268, %v267
    %v272 = vpack.c.b16 %v270, %v269
    %v276 = vsel %vm182, %v262, 0
    %278 = vmatprep.subr.bf16.mxu0 0
    %279 = vmatpush1.bf16.msra.mxu0 %v271
    %280 = vmatprep.subr.bf16.mxu0 0
    %281 = vmatpush1.bf16.msra.mxu0 %v272
    %282 = vmatprep.subr.bf16.mxu0 0
    %283 = vmatpush1.bf16.msra.mxu0 0
    %284 = vmatprep.subr.bf16.mxu0 0
    %285 = vmatpush1.bf16.msra.mxu0 0
    %286 = vmatprep.subr.bf16.mxu0 0
    %287 = vmatpush1.bf16.msra.mxu0 0
    %288 = vmatprep.subr.bf16.mxu0 0
    %289 = vmatpush1.bf16.msra.mxu0 0
    %290 = vmatprep.subr.bf16.mxu0 0
    %291 = vmatpush1.bf16.msra.mxu0 0
    %292 = vmatprep.subr.bf16.mxu0 0
    %293 = vmatpush1.bf16.msra.mxu0 0
    %294 = vmatprep.subr.bf16.mxu0 0
    %295 = vmatpush1.bf16.msra.mxu0 0
    %296 = vmatprep.subr.bf16.mxu0 0
    %297 = vmatpush1.bf16.msra.mxu0 0
    %298 = vmatprep.subr.bf16.mxu0 0
    %299 = vmatpush1.bf16.msra.mxu0 0
    %300 = vmatprep.subr.bf16.mxu0 0
    %301 = vmatpush1.bf16.msra.mxu0 0
    %302 = vmatprep.subr.bf16.mxu0 0
    %303 = vmatpush1.bf16.msra.mxu0 0
    %304 = vmatprep.subr.bf16.mxu0 0
    %305 = vmatpush1.bf16.msra.mxu0 0
    %306 = vmatprep.subr.bf16.mxu0 0
    %307 = vmatpush1.bf16.msra.mxu0 0
    %308 = vmatprep.subr.bf16.mxu0 0
    %309 = vmatpush1.bf16.msra.mxu0 0
    %310 = vmatprep.mubr.bf16.mxu0 0
    %311 = vmatmul.mubr.bf16.gmra.mrb[0].mxu0 %v276
    %v312 = vpop.f32.mrb[0].mxu0
    %v313 = vadd.f32 0.0, %v312
    %v314 = vpop.f32.mrb[0].mxu0
    %v315 = vpop.f32.mrb[0].mxu0
    %v316 = vadd.f32 0.0, %v315
    %v317 = vpop.f32.mrb[0].mxu0
    %318 = vdwg.mxu0
    %v319 = vadd.f32 %v227, %v313
    %v320 = vadd.f32 %v228, %v316
    %321 = vset.pattern.permute.xlu0 2
    %322 = vperm.xlu0 %321, %v71
    %v323 = vpop.permute.xlu0 %322
    %v326 = vunpack.c.l.s4 839922192
    %v327 = vunpack.c.0.s8 %v326
    %v328 = vlaneseq
    %v329 = vshrl.u32 %v328, 7
    %v330 = vsub.s32 %v327, %v329
    %v331 = vrot.slane %v323, %v330
    %332 = vset.pattern.permute.xlu0 2
    %333 = vperm.xlu0 %332, %v72
    %v334 = vpop.permute.xlu0 %333
    %v337 = vunpack.c.l.s4 839922192
    %v338 = vunpack.c.0.s8 %v337
    %v339 = vlaneseq
    %v340 = vshrl.u32 %v339, 7
    %v341 = vsub.s32 %v338, %v340
    %v342 = vrot.slane %v334, %v341
    %v343 = vmul.bf16 %v69, %v331
    %v344 = vmul.bf16 %v70, %v342
    %s345 = scalar_lea.vmem [#allocation8], 32
    %v346 = vld [vmem:[%s345] sm:$0xf]
    %v347 = vld [vmem:[%s345 + $0x4] sm:$0xf]
    %v348 = vld [vmem:[%s345 + $0x8] sm:$0xf]
    %v349 = vld [vmem:[%s345 + $0xc] sm:$0xf]
    %v352 = vunpack.c.l.b16 %v343
    %v353 = vunpack.c.l.b16 %v344
    %v354 = vpack.c.b16 %v353, %v352
    %v359 = vunpack.c.l.b16 %v346
    %v360 = vunpack.c.l.b16 %v347
    %v361 = vunpack.c.l.b16 %v348
    %v362 = vunpack.c.l.b16 %v349
    %v363 = vpack.c.b16 %v360, %v359
    %v364 = vpack.c.b16 %v362, %v361
    %v368 = vsel %vm182, %v354, 0
    %370 = vmatprep.subr.bf16.mxu0 0
    %371 = vmatpush1.bf16.msra.mxu0 %v363
    %372 = vmatprep.subr.bf16.mxu0 0
    %373 = vmatpush1.bf16.msra.mxu0 %v364
    %374 = vmatprep.subr.bf16.mxu0 0
    %375 = vmatpush1.bf16.msra.mxu0 0
    %376 = vmatprep.subr.bf16.mxu0 0
    %377 = vmatpush1.bf16.msra.mxu0 0
    %378 = vmatprep.subr.bf16.mxu0 0
    %379 = vmatpush1.bf16.msra.mxu0 0
    %380 = vmatprep.subr.bf16.mxu0 0
    %381 = vmatpush1.bf16.msra.mxu0 0
    %382 = vmatprep.subr.bf16.mxu0 0
    %383 = vmatpush1.bf16.msra.mxu0 0
    %384 = vmatprep.subr.bf16.mxu0 0
    %385 = vmatpush1.bf16.msra.mxu0 0
    %386 = vmatprep.subr.bf16.mxu0 0
    %387 = vmatpush1.bf16.msra.mxu0 0
    %388 = vmatprep.subr.bf16.mxu0 0
    %389 = vmatpush1.bf16.msra.mxu0 0
    %390 = vmatprep.subr.bf16.mxu0 0
    %391 = vmatpush1.bf16.msra.mxu0 0
    %392 = vmatprep.subr.bf16.mxu0 0
    %393 = vmatpush1.bf16.msra.mxu0 0
    %394 = vmatprep.subr.bf16.mxu0 0
    %395 = vmatpush1.bf16.msra.mxu0 0
    %396 = vmatprep.subr.bf16.mxu0 0
    %397 = vmatpush1.bf16.msra.mxu0 0
    %398 = vmatprep.subr.bf16.mxu0 0
    %399 = vmatpush1.bf16.msra.mxu0 0
    %400 = vmatprep.subr.bf16.mxu0 0
    %401 = vmatpush1.bf16.msra.mxu0 0
    %402 = vmatprep.mubr.bf16.mxu0 0
    %403 = vmatmul.mubr.bf16.gmra.mrb[0].mxu0 %v368
    %v404 = vpop.f32.mrb[0].mxu0
    %v405 = vadd.f32 0.0, %v404
    %v406 = vpop.f32.mrb[0].mxu0
    %v407 = vpop.f32.mrb[0].mxu0
    %v408 = vadd.f32 0.0, %v407
    %v409 = vpop.f32.mrb[0].mxu0
    %410 = vdwg.mxu0
    %v411 = vadd.f32 %v319, %v405
    %v412 = vadd.f32 %v320, %v408
    %413 = vset.pattern.permute.xlu0 3
    %414 = vperm.xlu0 %413, %v71
    %v415 = vpop.permute.xlu0 %414
    %v418 = vunpack.c.l.s4 839922192
    %v419 = vunpack.c.0.s8 %v418
    %v420 = vlaneseq
    %v421 = vshrl.u32 %v420, 7
    %v422 = vsub.s32 %v419, %v421
    %v423 = vrot.slane %v415, %v422
    %424 = vset.pattern.permute.xlu0 3
    %425 = vperm.xlu0 %424, %v72
    %v426 = vpop.permute.xlu0 %425
    %v429 = vunpack.c.l.s4 839922192
    %v430 = vunpack.c.0.s8 %v429
    %v431 = vlaneseq
    %v432 = vshrl.u32 %v431, 7
    %v433 = vsub.s32 %v430, %v432
    %v434 = vrot.slane %v426, %v433
    %v435 = vmul.bf16 %v69, %v423
    %v436 = vmul.bf16 %v70, %v434
    %s437 = scalar_lea.vmem [#allocation8], 48
    %v438 = vld [vmem:[%s437] sm:$0xf]
    %v439 = vld [vmem:[%s437 + $0x4] sm:$0xf]
    %v440 = vld [vmem:[%s437 + $0x8] sm:$0xf]
    %v441 = vld [vmem:[%s437 + $0xc] sm:$0xf]
    %v444 = vunpack.c.l.b16 %v435
    %v445 = vunpack.c.l.b16 %v436
    %v446 = vpack.c.b16 %v445, %v444
    %v451 = vunpack.c.l.b16 %v438
    %v452 = vunpack.c.l.b16 %v439
    %v453 = vunpack.c.l.b16 %v440
    %v454 = vunpack.c.l.b16 %v441
    %v455 = vpack.c.b16 %v452, %v451
    %v456 = vpack.c.b16 %v454, %v453
    %v460 = vsel %vm182, %v446, 0
    %462 = vmatprep.subr.bf16.mxu0 0
    %463 = vmatpush1.bf16.msra.mxu0 %v455
    %464 = vmatprep.subr.bf16.mxu0 0
    %465 = vmatpush1.bf16.msra.mxu0 %v456
    %466 = vmatprep.subr.bf16.mxu0 0
    %467 = vmatpush1.bf16.msra.mxu0 0
    %468 = vmatprep.subr.bf16.mxu0 0
    %469 = vmatpush1.bf16.msra.mxu0 0
    %470 = vmatprep.subr.bf16.mxu0 0
    %471 = vmatpush1.bf16.msra.mxu0 0
    %472 = vmatprep.subr.bf16.mxu0 0
    %473 = vmatpush1.bf16.msra.mxu0 0
    %474 = vmatprep.subr.bf16.mxu0 0
    %475 = vmatpush1.bf16.msra.mxu0 0
    %476 = vmatprep.subr.bf16.mxu0 0
    %477 = vmatpush1.bf16.msra.mxu0 0
    %478 = vmatprep.subr.bf16.mxu0 0
    %479 = vmatpush1.bf16.msra.mxu0 0
    %480 = vmatprep.subr.bf16.mxu0 0
    %481 = vmatpush1.bf16.msra.mxu0 0
    %482 = vmatprep.subr.bf16.mxu0 0
    %483 = vmatpush1.bf16.msra.mxu0 0
    %484 = vmatprep.subr.bf16.mxu0 0
    %485 = vmatpush1.bf16.msra.mxu0 0
    %486 = vmatprep.subr.bf16.mxu0 0
    %487 = vmatpush1.bf16.msra.mxu0 0
    %488 = vmatprep.subr.bf16.mxu0 0
    %489 = vmatpush1.bf16.msra.mxu0 0
    %490 = vmatprep.subr.bf16.mxu0 0
    %491 = vmatpush1.bf16.msra.mxu0 0
    %492 = vmatprep.subr.bf16.mxu0 0
    %493 = vmatpush1.bf16.msra.mxu0 0
    %494 = vmatprep.mubr.bf16.mxu0 0
    %495 = vmatmul.mubr.bf16.gmra.mrb[0].mxu0 %v460
    %v496 = vpop.f32.mrb[0].mxu0
    %v497 = vadd.f32 0.0, %v496
    %v498 = vpop.f32.mrb[0].mxu0
    %v499 = vpop.f32.mrb[0].mxu0
    %v500 = vadd.f32 0.0, %v499
    %v501 = vpop.f32.mrb[0].mxu0
    %502 = vdwg.mxu0
    %v503 = vadd.f32 %v411, %v497
    %v504 = vadd.f32 %v412, %v500
    %505 = vset.pattern.permute.xlu0 4
    %506 = vperm.xlu0 %505, %v71
    %v507 = vpop.permute.xlu0 %506
    %v510 = vunpack.c.l.s4 839922192
    %v511 = vunpack.c.0.s8 %v510
    %v512 = vlaneseq
    %v513 = vshrl.u32 %v512, 7
    %v514 = vsub.s32 %v511, %v513
    %v515 = vrot.slane %v507, %v514
    %516 = vset.pattern.permute.xlu0 4
    %517 = vperm.xlu0 %516, %v72
    %v518 = vpop.permute.xlu0 %517
    %v521 = vunpack.c.l.s4 839922192
    %v522 = vunpack.c.0.s8 %v521
    %v523 = vlaneseq
    %v524 = vshrl.u32 %v523, 7
    %v525 = vsub.s32 %v522, %v524
    %v526 = vrot.slane %v518, %v525
    %v527 = vmul.bf16 %v69, %v515
    %v528 = vmul.bf16 %v70, %v526
    %s529 = scalar_lea.vmem [#allocation8], 64
    %v530 = vld [vmem:[%s529] sm:$0xf]
    %v531 = vld [vmem:[%s529 + $0x4] sm:$0xf]
    %v532 = vld [vmem:[%s529 + $0x8] sm:$0xf]
    %v533 = vld [vmem:[%s529 + $0xc] sm:$0xf]
    %v536 = vunpack.c.l.b16 %v527
    %v537 = vunpack.c.l.b16 %v528
    %v538 = vpack.c.b16 %v537, %v536
    %v543 = vunpack.c.l.b16 %v530
    %v544 = vunpack.c.l.b16 %v531
    %v545 = vunpack.c.l.b16 %v532
    %v546 = vunpack.c.l.b16 %v533
    %v547 = vpack.c.b16 %v544, %v543
    %v548 = vpack.c.b16 %v546, %v545
    %v552 = vsel %vm182, %v538, 0
    %554 = vmatprep.subr.bf16.mxu0 0
    %555 = vmatpush1.bf16.msra.mxu0 %v547
    %556 = vmatprep.subr.bf16.mxu0 0
    %557 = vmatpush1.bf16.msra.mxu0 %v548
    %558 = vmatprep.subr.bf16.mxu0 0
    %559 = vmatpush1.bf16.msra.mxu0 0
    %560 = vmatprep.subr.bf16.mxu0 0
    %561 = vmatpush1.bf16.msra.mxu0 0
    %562 = vmatprep.subr.bf16.mxu0 0
    %563 = vmatpush1.bf16.msra.mxu0 0
    %564 = vmatprep.subr.bf16.mxu0 0
    %565 = vmatpush1.bf16.msra.mxu0 0
    %566 = vmatprep.subr.bf16.mxu0 0
    %567 = vmatpush1.bf16.msra.mxu0 0
    %568 = vmatprep.subr.bf16.mxu0 0
    %569 = vmatpush1.bf16.msra.mxu0 0
    %570 = vmatprep.subr.bf16.mxu0 0
    %571 = vmatpush1.bf16.msra.mxu0 0
    %572 = vmatprep.subr.bf16.mxu0 0
    %573 = vmatpush1.bf16.msra.mxu0 0
    %574 = vmatprep.subr.bf16.mxu0 0
    %575 = vmatpush1.bf16.msra.mxu0 0
    %576 = vmatprep.subr.bf16.mxu0 0
    %577 = vmatpush1.bf16.msra.mxu0 0
    %578 = vmatprep.subr.bf16.mxu0 0
    %579 = vmatpush1.bf16.msra.mxu0 0
    %580 = vmatprep.subr.bf16.mxu0 0
    %581 = vmatpush1.bf16.msra.mxu0 0
    %582 = vmatprep.subr.bf16.mxu0 0
    %583 = vmatpush1.bf16.msra.mxu0 0
    %584 = vmatprep.subr.bf16.mxu0 0
    %585 = vmatpush1.bf16.msra.mxu0 0
    %586 = vmatprep.mubr.bf16.mxu0 0
    %587 = vmatmul.mubr.bf16.gmra.mrb[0].mxu0 %v552
    %v588 = vpop.f32.mrb[0].mxu0
    %v589 = vadd.f32 0.0, %v588
    %v590 = vpop.f32.mrb[0].mxu0
    %v591 = vpop.f32.mrb[0].mxu0
    %v592 = vadd.f32 0.0, %v591
    %v593 = vpop.f32.mrb[0].mxu0
    %594 = vdwg.mxu0
    %v595 = vadd.f32 %v503, %v589
    %v596 = vadd.f32 %v504, %v592
    %597 = vset.pattern.permute.xlu0 5
    %598 = vperm.xlu0 %597, %v71
    %v599 = vpop.permute.xlu0 %598
    %v602 = vunpack.c.l.s4 839922192
    %v603 = vunpack.c.0.s8 %v602
    %v604 = vlaneseq
    %v605 = vshrl.u32 %v604, 7
    %v606 = vsub.s32 %v603, %v605
    %v607 = vrot.slane %v599, %v606
    %608 = vset.pattern.permute.xlu0 5
    %609 = vperm.xlu0 %608, %v72
    %v610 = vpop.permute.xlu0 %609
    %v613 = vunpack.c.l.s4 839922192
    %v614 = vunpack.c.0.s8 %v613
    %v615 = vlaneseq
    %v616 = vshrl.u32 %v615, 7
    %v617 = vsub.s32 %v614, %v616
    %v618 = vrot.slane %v610, %v617
    %v619 = vmul.bf16 %v69, %v607
    %v620 = vmul.bf16 %v70, %v618
    %s621 = scalar_lea.vmem [#allocation8], 80
    %v622 = vld [vmem:[%s621] sm:$0xf]
    %v623 = vld [vmem:[%s621 + $0x4] sm:$0xf]
    %v624 = vld [vmem:[%s621 + $0x8] sm:$0xf]
    %v625 = vld [vmem:[%s621 + $0xc] sm:$0xf]
    %v628 = vunpack.c.l.b16 %v619
    %v629 = vunpack.c.l.b16 %v620
    %v630 = vpack.c.b16 %v629, %v628
    %v635 = vunpack.c.l.b16 %v622
    %v636 = vunpack.c.l.b16 %v623
    %v637 = vunpack.c.l.b16 %v624
    %v638 = vunpack.c.l.b16 %v625
    %v639 = vpack.c.b16 %v636, %v635
    %v640 = vpack.c.b16 %v638, %v637
    %v644 = vsel %vm182, %v630, 0
    %646 = vmatprep.subr.bf16.mxu0 0
    %647 = vmatpush1.bf16.msra.mxu0 %v639
    %648 = vmatprep.subr.bf16.mxu0 0
    %649 = vmatpush1.bf16.msra.mxu0 %v640
    %650 = vmatprep.subr.bf16.mxu0 0
    %651 = vmatpush1.bf16.msra.mxu0 0
    %652 = vmatprep.subr.bf16.mxu0 0
    %653 = vmatpush1.bf16.msra.mxu0 0
    %654 = vmatprep.subr.bf16.mxu0 0
    %655 = vmatpush1.bf16.msra.mxu0 0
    %656 = vmatprep.subr.bf16.mxu0 0
    %657 = vmatpush1.bf16.msra.mxu0 0
    %658 = vmatprep.subr.bf16.mxu0 0
    %659 = vmatpush1.bf16.msra.mxu0 0
    %660 = vmatprep.subr.bf16.mxu0 0
    %661 = vmatpush1.bf16.msra.mxu0 0
    %662 = vmatprep.subr.bf16.mxu0 0
    %663 = vmatpush1.bf16.msra.mxu0 0
    %664 = vmatprep.subr.bf16.mxu0 0
    %665 = vmatpush1.bf16.msra.mxu0 0
    %666 = vmatprep.subr.bf16.mxu0 0
    %667 = vmatpush1.bf16.msra.mxu0 0
    %668 = vmatprep.subr.bf16.mxu0 0
    %669 = vmatpush1.bf16.msra.mxu0 0
    %670 = vmatprep.subr.bf16.mxu0 0
    %671 = vmatpush1.bf16.msra.mxu0 0
    %672 = vmatprep.subr.bf16.mxu0 0
    %673 = vmatpush1.bf16.msra.mxu0 0
    %674 = vmatprep.subr.bf16.mxu0 0
    %675 = vmatpush1.bf16.msra.mxu0 0
    %676 = vmatprep.subr.bf16.mxu0 0
    %677 = vmatpush1.bf16.msra.mxu0 0
    %678 = vmatprep.mubr.bf16.mxu0 0
    %679 = vmatmul.mubr.bf16.gmra.mrb[0].mxu0 %v644
    %v680 = vpop.f32.mrb[0].mxu0
    %v681 = vadd.f32 0.0, %v680
    %v682 = vpop.f32.mrb[0].mxu0
    %v683 = vpop.f32.mrb[0].mxu0
    %v684 = vadd.f32 0.0, %v683
    %v685 = vpop.f32.mrb[0].mxu0
    %686 = vdwg.mxu0
    %v687 = vadd.f32 %v595, %v681
    %v688 = vadd.f32 %v596, %v684
    %689 = vset.pattern.permute.xlu0 6
    %690 = vperm.xlu0 %689, %v71
    %v691 = vpop.permute.xlu0 %690
    %v694 = vunpack.c.l.s4 839922192
    %v695 = vunpack.c.0.s8 %v694
    %v696 = vlaneseq
    %v697 = vshrl.u32 %v696, 7
    %v698 = vsub.s32 %v695, %v697
    %v699 = vrot.slane %v691, %v698
    %700 = vset.pattern.permute.xlu0 6
    %701 = vperm.xlu0 %700, %v72
    %v702 = vpop.permute.xlu0 %701
    %v705 = vunpack.c.l.s4 839922192
    %v706 = vunpack.c.0.s8 %v705
    %v707 = vlaneseq
    %v708 = vshrl.u32 %v707, 7
    %v709 = vsub.s32 %v706, %v708
    %v710 = vrot.slane %v702, %v709
    %v711 = vmul.bf16 %v69, %v699
    %v712 = vmul.bf16 %v70, %v710
    %s713 = scalar_lea.vmem [#allocation8], 96
    %v714 = vld [vmem:[%s713] sm:$0xf]
    %v715 = vld [vmem:[%s713 + $0x4] sm:$0xf]
    %v716 = vld [vmem:[%s713 + $0x8] sm:$0xf]
    %v717 = vld [vmem:[%s713 + $0xc] sm:$0xf]
    %v720 = vunpack.c.l.b16 %v711
    %v721 = vunpack.c.l.b16 %v712
    %v722 = vpack.c.b16 %v721, %v720
    %v727 = vunpack.c.l.b16 %v714
    %v728 = vunpack.c.l.b16 %v715
    %v729 = vunpack.c.l.b16 %v716
    %v730 = vunpack.c.l.b16 %v717
    %v731 = vpack.c.b16 %v728, %v727
    %v732 = vpack.c.b16 %v730, %v729
    %v736 = vsel %vm182, %v722, 0
    %738 = vmatprep.subr.bf16.mxu0 0
    %739 = vmatpush1.bf16.msra.mxu0 %v731
    %740 = vmatprep.subr.bf16.mxu0 0
    %741 = vmatpush1.bf16.msra.mxu0 %v732
    %742 = vmatprep.subr.bf16.mxu0 0
    %743 = vmatpush1.bf16.msra.mxu0 0
    %744 = vmatprep.subr.bf16.mxu0 0
    %745 = vmatpush1.bf16.msra.mxu0 0
    %746 = vmatprep.subr.bf16.mxu0 0
    %747 = vmatpush1.bf16.msra.mxu0 0
    %748 = vmatprep.subr.bf16.mxu0 0
    %749 = vmatpush1.bf16.msra.mxu0 0
    %750 = vmatprep.subr.bf16.mxu0 0
    %751 = vmatpush1.bf16.msra.mxu0 0
    %752 = vmatprep.subr.bf16.mxu0 0
    %753 = vmatpush1.bf16.msra.mxu0 0
    %754 = vmatprep.subr.bf16.mxu0 0
    %755 = vmatpush1.bf16.msra.mxu0 0
    %756 = vmatprep.subr.bf16.mxu0 0
    %757 = vmatpush1.bf16.msra.mxu0 0
    %758 = vmatprep.subr.bf16.mxu0 0
    %759 = vmatpush1.bf16.msra.mxu0 0
    %760 = vmatprep.subr.bf16.mxu0 0
    %761 = vmatpush1.bf16.msra.mxu0 0
    %762 = vmatprep.subr.bf16.mxu0 0
    %763 = vmatpush1.bf16.msra.mxu0 0
    %764 = vmatprep.subr.bf16.mxu0 0
    %765 = vmatpush1.bf16.msra.mxu0 0
    %766 = vmatprep.subr.bf16.mxu0 0
    %767 = vmatpush1.bf16.msra.mxu0 0
    %768 = vmatprep.subr.bf16.mxu0 0
    %769 = vmatpush1.bf16.msra.mxu0 0
    %770 = vmatprep.mubr.bf16.mxu0 0
    %771 = vmatmul.mubr.bf16.gmra.mrb[0].mxu0 %v736
    %v772 = vpop.f32.mrb[0].mxu0
    %v773 = vadd.f32 0.0, %v772
    %v774 = vpop.f32.mrb[0].mxu0
    %v775 = vpop.f32.mrb[0].mxu0
    %v776 = vadd.f32 0.0, %v775
    %v777 = vpop.f32.mrb[0].mxu0
    %778 = vdwg.mxu0
    %v779 = vadd.f32 %v687, %v773
    %v780 = vadd.f32 %v688, %v776
    %781 = vset.pattern.permute.xlu0 7
    %782 = vperm.xlu0 %781, %v71
    %v783 = vpop.permute.xlu0 %782
    %v786 = vunpack.c.l.s4 839922192
    %v787 = vunpack.c.0.s8 %v786
    %v788 = vlaneseq
    %v789 = vshrl.u32 %v788, 7
    %v790 = vsub.s32 %v787, %v789
    %v791 = vrot.slane %v783, %v790
    %792 = vset.pattern.permute.xlu0 7
    %793 = vperm.xlu0 %792, %v72
    %v794 = vpop.permute.xlu0 %793
    %v797 = vunpack.c.l.s4 839922192
    %v798 = vunpack.c.0.s8 %v797
    %v799 = vlaneseq
    %v800 = vshrl.u32 %v799, 7
    %v801 = vsub.s32 %v798, %v800
    %v802 = vrot.slane %v794, %v801
    %v803 = vmul.bf16 %v69, %v791
    %v804 = vmul.bf16 %v70, %v802
    %s805 = scalar_lea.vmem [#allocation8], 112
    %v806 = vld [vmem:[%s805] sm:$0xf]
    %v807 = vld [vmem:[%s805 + $0x4] sm:$0xf]
    %v808 = vld [vmem:[%s805 + $0x8] sm:$0xf]
    %v809 = vld [vmem:[%s805 + $0xc] sm:$0xf]
    %v812 = vunpack.c.l.b16 %v803
    %v813 = vunpack.c.l.b16 %v804
    %v814 = vpack.c.b16 %v813, %v812
    %v819 = vunpack.c.l.b16 %v806
    %v820 = vunpack.c.l.b16 %v807
    %v821 = vunpack.c.l.b16 %v808
    %v822 = vunpack.c.l.b16 %v809
    %v823 = vpack.c.b16 %v820, %v819
    %v824 = vpack.c.b16 %v822, %v821
    %v828 = vsel %vm182, %v814, 0
    %830 = vmatprep.subr.bf16.mxu0 0
    %831 = vmatpush1.bf16.msra.mxu0 %v823
    %832 = vmatprep.subr.bf16.mxu0 0
    %833 = vmatpush1.bf16.msra.mxu0 %v824
    %834 = vmatprep.subr.bf16.mxu0 0
    %835 = vmatpush1.bf16.msra.mxu0 0
    %836 = vmatprep.subr.bf16.mxu0 0
    %837 = vmatpush1.bf16.msra.mxu0 0
    %838 = vmatprep.subr.bf16.mxu0 0
    %839 = vmatpush1.bf16.msra.mxu0 0
    %840 = vmatprep.subr.bf16.mxu0 0
    %841 = vmatpush1.bf16.msra.mxu0 0
    %842 = vmatprep.subr.bf16.mxu0 0
    %843 = vmatpush1.bf16.msra.mxu0 0
    %844 = vmatprep.subr.bf16.mxu0 0
    %845 = vmatpush1.bf16.msra.mxu0 0
    %846 = vmatprep.subr.bf16.mxu0 0
    %847 = vmatpush1.bf16.msra.mxu0 0
    %848 = vmatprep.subr.bf16.mxu0 0
    %849 = vmatpush1.bf16.msra.mxu0 0
    %850 = vmatprep.subr.bf16.mxu0 0
    %851 = vmatpush1.bf16.msra.mxu0 0
    %852 = vmatprep.subr.bf16.mxu0 0
    %853 = vmatpush1.bf16.msra.mxu0 0
    %854 = vmatprep.subr.bf16.mxu0 0
    %855 = vmatpush1.bf16.msra.mxu0 0
    %856 = vmatprep.subr.bf16.mxu0 0
    %857 = vmatpush1.bf16.msra.mxu0 0
    %858 = vmatprep.subr.bf16.mxu0 0
    %859 = vmatpush1.bf16.msra.mxu0 0
    %860 = vmatprep.subr.bf16.mxu0 0
    %861 = vmatpush1.bf16.msra.mxu0 0
    %862 = vmatprep.mubr.bf16.mxu0 0
    %863 = vmatmul.mubr.bf16.gmra.mrb[0].mxu0 %v828
    %v864 = vpop.f32.mrb[0].mxu0
    %v865 = vadd.f32 0.0, %v864
    %v866 = vpop.f32.mrb[0].mxu0
    %v867 = vpop.f32.mrb[0].mxu0
    %v868 = vadd.f32 0.0, %v867
    %v869 = vpop.f32.mrb[0].mxu0
    %870 = vdwg.mxu0
    %v871 = vadd.f32 %v779, %v865
    %v872 = vadd.f32 %v780, %v868
    %873 = vset.pattern.permute.xlu0 8
    %874 = vperm.xlu0 %873, %v71
    %v875 = vpop.permute.xlu0 %874
    %v878 = vunpack.c.l.s4 839922192
    %v879 = vunpack.c.0.s8 %v878
    %v880 = vlaneseq
    %v881 = vshrl.u32 %v880, 7
    %v882 = vsub.s32 %v879, %v881
    %v883 = vrot.slane %v875, %v882
    %884 = vset.pattern.permute.xlu0 8
    %885 = vperm.xlu0 %884, %v72
    %v886 = vpop.permute.xlu0 %885
    %v889 = vunpack.c.l.s4 839922192
    %v890 = vunpack.c.0.s8 %v889
    %v891 = vlaneseq
    %v892 = vshrl.u32 %v891, 7
    %v893 = vsub.s32 %v890, %v892
    %v894 = vrot.slane %v886, %v893
    %v895 = vmul.bf16 %v69, %v883
    %v896 = vmul.bf16 %v70, %v894
    %s897 = scalar_lea.vmem [#allocation8], 128
    %v898 = vld [vmem:[%s897] sm:$0xf]
    %v899 = vld [vmem:[%s897 + $0x4] sm:$0xf]
    %v900 = vld [vmem:[%s897 + $0x8] sm:$0xf]
    %v901 = vld [vmem:[%s897 + $0xc] sm:$0xf]
    %v904 = vunpack.c.l.b16 %v895
    %v905 = vunpack.c.l.b16 %v896
    %v906 = vpack.c.b16 %v905, %v904
    %v911 = vunpack.c.l.b16 %v898
    %v912 = vunpack.c.l.b16 %v899
    %v913 = vunpack.c.l.b16 %v900
    %v914 = vunpack.c.l.b16 %v901
    %v915 = vpack.c.b16 %v912, %v911
    %v916 = vpack.c.b16 %v914, %v913
    %v920 = vsel %vm182, %v906, 0
    %922 = vmatprep.subr.bf16.mxu0 0
    %923 = vmatpush1.bf16.msra.mxu0 %v915
    %924 = vmatprep.subr.bf16.mxu0 0
    %925 = vmatpush1.bf16.msra.mxu0 %v916
    %926 = vmatprep.subr.bf16.mxu0 0
    %927 = vmatpush1.bf16.msra.mxu0 0
    %928 = vmatprep.subr.bf16.mxu0 0
    %929 = vmatpush1.bf16.msra.mxu0 0
    %930 = vmatprep.subr.bf16.mxu0 0
    %931 = vmatpush1.bf16.msra.mxu0 0
    %932 = vmatprep.subr.bf16.mxu0 0
    %933 = vmatpush1.bf16.msra.mxu0 0
    %934 = vmatprep.subr.bf16.mxu0 0
    %935 = vmatpush1.bf16.msra.mxu0 0
    %936 = vmatprep.subr.bf16.mxu0 0
    %937 = vmatpush1.bf16.msra.mxu0 0
    %938 = vmatprep.subr.bf16.mxu0 0
    %939 = vmatpush1.bf16.msra.mxu0 0
    %940 = vmatprep.subr.bf16.mxu0 0
    %941 = vmatpush1.bf16.msra.mxu0 0
    %942 = vmatprep.subr.bf16.mxu0 0
    %943 = vmatpush1.bf16.msra.mxu0 0
    %944 = vmatprep.subr.bf16.mxu0 0
    %945 = vmatpush1.bf16.msra.mxu0 0
    %946 = vmatprep.subr.bf16.mxu0 0
    %947 = vmatpush1.bf16.msra.mxu0 0
    %948 = vmatprep.subr.bf16.mxu0 0
    %949 = vmatpush1.bf16.msra.mxu0 0
    %950 = vmatprep.subr.bf16.mxu0 0
    %951 = vmatpush1.bf16.msra.mxu0 0
    %952 = vmatprep.subr.bf16.mxu0 0
    %953 = vmatpush1.bf16.msra.mxu0 0
    %954 = vmatprep.mubr.bf16.mxu0 0
    %955 = vmatmul.mubr.bf16.gmra.mrb[0].mxu0 %v920
    %v956 = vpop.f32.mrb[0].mxu0
    %v957 = vadd.f32 0.0, %v956
    %v958 = vpop.f32.mrb[0].mxu0
    %v959 = vpop.f32.mrb[0].mxu0
    %v960 = vadd.f32 0.0, %v959
    %v961 = vpop.f32.mrb[0].mxu0
    %962 = vdwg.mxu0
    %v963 = vadd.f32 %v871, %v957
    %v964 = vadd.f32 %v872, %v960
    %965 = vset.pattern.permute.xlu0 9
    %966 = vperm.xlu0 %965, %v71
    %v967 = vpop.permute.xlu0 %966
    %v970 = vunpack.c.l.s4 839922192
    %v971 = vunpack.c.0.s8 %v970
    %v972 = vlaneseq
    %v973 = vshrl.u32 %v972, 7
    %v974 = vsub.s32 %v971, %v973
    %v975 = vrot.slane %v967, %v974
    %976 = vset.pattern.permute.xlu0 9
    %977 = vperm.xlu0 %976, %v72
    %v978 = vpop.permute.xlu0 %977
    %v981 = vunpack.c.l.s4 839922192
    %v982 = vunpack.c.0.s8 %v981
    %v983 = vlaneseq
    %v984 = vshrl.u32 %v983, 7
    %v985 = vsub.s32 %v982, %v984
    %v986 = vrot.slane %v978, %v985
    %v987 = vmul.bf16 %v69, %v975
    %v988 = vmul.bf16 %v70, %v986
    %s989 = scalar_lea.vmem [#allocation8], 144
    %v990 = vld [vmem:[%s989] sm:$0xf]
    %v991 = vld [vmem:[%s989 + $0x4] sm:$0xf]
    %v992 = vld [vmem:[%s989 + $0x8] sm:$0xf]
    %v993 = vld [vmem:[%s989 + $0xc] sm:$0xf]
    %v996 = vunpack.c.l.b16 %v987
    %v997 = vunpack.c.l.b16 %v988
    %v998 = vpack.c.b16 %v997, %v996
    %v1003 = vunpack.c.l.b16 %v990
    %v1004 = vunpack.c.l.b16 %v991
    %v1005 = vunpack.c.l.b16 %v992
    %v1006 = vunpack.c.l.b16 %v993
    %v1007 = vpack.c.b16 %v1004, %v1003
    %v1008 = vpack.c.b16 %v1006, %v1005
    %v1012 = vsel %vm182, %v998, 0
    %1014 = vmatprep.subr.bf16.mxu0 0
    %1015 = vmatpush1.bf16.msra.mxu0 %v1007
    %1016 = vmatprep.subr.bf16.mxu0 0
    %1017 = vmatpush1.bf16.msra.mxu0 %v1008
    %1018 = vmatprep.subr.bf16.mxu0 0
    %1019 = vmatpush1.bf16.msra.mxu0 0
    %1020 = vmatprep.subr.bf16.mxu0 0
    %1021 = vmatpush1.bf16.msra.mxu0 0
    %1022 = vmatprep.subr.bf16.mxu0 0
    %1023 = vmatpush1.bf16.msra.mxu0 0
    %1024 = vmatprep.subr.bf16.mxu0 0
    %1025 = vmatpush1.bf16.msra.mxu0 0
    %1026 = vmatprep.subr.bf16.mxu0 0
    %1027 = vmatpush1.bf16.msra.mxu0 0
    %1028 = vmatprep.subr.bf16.mxu0 0
    %1029 = vmatpush1.bf16.msra.mxu0 0
    %1030 = vmatprep.subr.bf16.mxu0 0
    %1031 = vmatpush1.bf16.msra.mxu0 0
    %1032 = vmatprep.subr.bf16.mxu0 0
    %1033 = vmatpush1.bf16.msra.mxu0 0
    %1034 = vmatprep.subr.bf16.mxu0 0
    %1035 = vmatpush1.bf16.msra.mxu0 0
    %1036 = vmatprep.subr.bf16.mxu0 0
    %1037 = vmatpush1.bf16.msra.mxu0 0
    %1038 = vmatprep.subr.bf16.mxu0 0
    %1039 = vmatpush1.bf16.msra.mxu0 0
    %1040 = vmatprep.subr.bf16.mxu0 0
    %1041 = vmatpush1.bf16.msra.mxu0 0
    %1042 = vmatprep.subr.bf16.mxu0 0
    %1043 = vmatpush1.bf16.msra.mxu0 0
    %1044 = vmatprep.subr.bf16.mxu0 0
    %1045 = vmatpush1.bf16.msra.mxu0 0
    %1046 = vmatprep.mubr.bf16.mxu0 0
    %1047 = vmatmul.mubr.bf16.gmra.mrb[0].mxu0 %v1012
    %v1048 = vpop.f32.mrb[0].mxu0
    %v1049 = vadd.f32 0.0, %v1048
    %v1050 = vpop.f32.mrb[0].mxu0
    %v1051 = vpop.f32.mrb[0].mxu0
    %v1052 = vadd.f32 0.0, %v1051
    %v1053 = vpop.f32.mrb[0].mxu0
    %1054 = vdwg.mxu0
    %v1055 = vadd.f32 %v963, %v1049
    %v1056 = vadd.f32 %v964, %v1052
    %1057 = vset.pattern.permute.xlu0 10
    %1058 = vperm.xlu0 %1057, %v71
    %v1059 = vpop.permute.xlu0 %1058
    %v1062 = vunpack.c.l.s4 839922192
    %v1063 = vunpack.c.0.s8 %v1062
    %v1064 = vlaneseq
    %v1065 = vshrl.u32 %v1064, 7
    %v1066 = vsub.s32 %v1063, %v1065
    %v1067 = vrot.slane %v1059, %v1066
    %1068 = vset.pattern.permute.xlu0 10
    %1069 = vperm.xlu0 %1068, %v72
    %v1070 = vpop.permute.xlu0 %1069
    %v1073 = vunpack.c.l.s4 839922192
    %v1074 = vunpack.c.0.s8 %v1073
    %v1075 = vlaneseq
    %v1076 = vshrl.u32 %v1075, 7
    %v1077 = vsub.s32 %v1074, %v1076
    %v1078 = vrot.slane %v1070, %v1077
    %v1079 = vmul.bf16 %v69, %v1067
    %v1080 = vmul.bf16 %v70, %v1078
    %s1081 = scalar_lea.vmem [#allocation8], 160
    %v1082 = vld [vmem:[%s1081] sm:$0xf]
    %v1083 = vld [vmem:[%s1081 + $0x4] sm:$0xf]
    %v1084 = vld [vmem:[%s1081 + $0x8] sm:$0xf]
    %v1085 = vld [vmem:[%s1081 + $0xc] sm:$0xf]
    %v1088 = vunpack.c.l.b16 %v1079
    %v1089 = vunpack.c.l.b16 %v1080
    %v1090 = vpack.c.b16 %v1089, %v1088
    %v1095 = vunpack.c.l.b16 %v1082
    %v1096 = vunpack.c.l.b16 %v1083
    %v1097 = vunpack.c.l.b16 %v1084
    %v1098 = vunpack.c.l.b16 %v1085
    %v1099 = vpack.c.b16 %v1096, %v1095
    %v1100 = vpack.c.b16 %v1098, %v1097
    %v1104 = vsel %vm182, %v1090, 0
    %1106 = vmatprep.subr.bf16.mxu0 0
    %1107 = vmatpush1.bf16.msra.mxu0 %v1099
    %1108 = vmatprep.subr.bf16.mxu0 0
    %1109 = vmatpush1.bf16.msra.mxu0 %v1100
    %1110 = vmatprep.subr.bf16.mxu0 0
    %1111 = vmatpush1.bf16.msra.mxu0 0
    %1112 = vmatprep.subr.bf16.mxu0 0
    %1113 = vmatpush1.bf16.msra.mxu0 0
    %1114 = vmatprep.subr.bf16.mxu0 0
    %1115 = vmatpush1.bf16.msra.mxu0 0
    %1116 = vmatprep.subr.bf16.mxu0 0
    %1117 = vmatpush1.bf16.msra.mxu0 0
    %1118 = vmatprep.subr.bf16.mxu0 0
    %1119 = vmatpush1.bf16.msra.mxu0 0
    %1120 = vmatprep.subr.bf16.mxu0 0
    %1121 = vmatpush1.bf16.msra.mxu0 0
    %1122 = vmatprep.subr.bf16.mxu0 0
    %1123 = vmatpush1.bf16.msra.mxu0 0
    %1124 = vmatprep.subr.bf16.mxu0 0
    %1125 = vmatpush1.bf16.msra.mxu0 0
    %1126 = vmatprep.subr.bf16.mxu0 0
    %1127 = vmatpush1.bf16.msra.mxu0 0
    %1128 = vmatprep.subr.bf16.mxu0 0
    %1129 = vmatpush1.bf16.msra.mxu0 0
    %1130 = vmatprep.subr.bf16.mxu0 0
    %1131 = vmatpush1.bf16.msra.mxu0 0
    %1132 = vmatprep.subr.bf16.mxu0 0
    %1133 = vmatpush1.bf16.msra.mxu0 0
    %1134 = vmatprep.subr.bf16.mxu0 0
    %1135 = vmatpush1.bf16.msra.mxu0 0
    %1136 = vmatprep.subr.bf16.mxu0 0
    %1137 = vmatpush1.bf16.msra.mxu0 0
    %1138 = vmatprep.mubr.bf16.mxu0 0
    %1139 = vmatmul.mubr.bf16.gmra.mrb[0].mxu0 %v1104
    %v1140 = vpop.f32.mrb[0].mxu0
    %v1141 = vadd.f32 0.0, %v1140
    %v1142 = vpop.f32.mrb[0].mxu0
    %v1143 = vpop.f32.mrb[0].mxu0
    %v1144 = vadd.f32 0.0, %v1143
    %v1145 = vpop.f32.mrb[0].mxu0
    %1146 = vdwg.mxu0
    %v1147 = vadd.f32 %v1055, %v1141
    %v1148 = vadd.f32 %v1056, %v1144
    %1149 = vset.pattern.permute.xlu0 11
    %1150 = vperm.xlu0 %1149, %v71
    %v1151 = vpop.permute.xlu0 %1150
    %v1154 = vunpack.c.l.s4 839922192
    %v1155 = vunpack.c.0.s8 %v1154
    %v1156 = vlaneseq
    %v1157 = vshrl.u32 %v1156, 7
    %v1158 = vsub.s32 %v1155, %v1157
    %v1159 = vrot.slane %v1151, %v1158
    %1160 = vset.pattern.permute.xlu0 11
    %1161 = vperm.xlu0 %1160, %v72
    %v1162 = vpop.permute.xlu0 %1161
    %v1165 = vunpack.c.l.s4 839922192
    %v1166 = vunpack.c.0.s8 %v1165
    %v1167 = vlaneseq
    %v1168 = vshrl.u32 %v1167, 7
    %v1169 = vsub.s32 %v1166, %v1168
    %v1170 = vrot.slane %v1162, %v1169
    %v1171 = vmul.bf16 %v69, %v1159
    %v1172 = vmul.bf16 %v70, %v1170
    %s1173 = scalar_lea.vmem [#allocation8], 176
    %v1174 = vld [vmem:[%s1173] sm:$0xf]
    %v1175 = vld [vmem:[%s1173 + $0x4] sm:$0xf]
    %v1176 = vld [vmem:[%s1173 + $0x8] sm:$0xf]
    %v1177 = vld [vmem:[%s1173 + $0xc] sm:$0xf]
    %v1180 = vunpack.c.l.b16 %v1171
    %v1181 = vunpack.c.l.b16 %v1172
    %v1182 = vpack.c.b16 %v1181, %v1180
    %v1187 = vunpack.c.l.b16 %v1174
    %v1188 = vunpack.c.l.b16 %v1175
    %v1189 = vunpack.c.l.b16 %v1176
    %v1190 = vunpack.c.l.b16 %v1177
    %v1191 = vpack.c.b16 %v1188, %v1187
    %v1192 = vpack.c.b16 %v1190, %v1189
    %v1196 = vsel %vm182, %v1182, 0
    %1198 = vmatprep.subr.bf16.mxu0 0
    %1199 = vmatpush1.bf16.msra.mxu0 %v1191
    %1200 = vmatprep.subr.bf16.mxu0 0
    %1201 = vmatpush1.bf16.msra.mxu0 %v1192
    %1202 = vmatprep.subr.bf16.mxu0 0
    %1203 = vmatpush1.bf16.msra.mxu0 0
    %1204 = vmatprep.subr.bf16.mxu0 0
    %1205 = vmatpush1.bf16.msra.mxu0 0
    %1206 = vmatprep.subr.bf16.mxu0 0
    %1207 = vmatpush1.bf16.msra.mxu0 0
    %1208 = vmatprep.subr.bf16.mxu0 0
    %1209 = vmatpush1.bf16.msra.mxu0 0
    %1210 = vmatprep.subr.bf16.mxu0 0
    %1211 = vmatpush1.bf16.msra.mxu0 0
    %1212 = vmatprep.subr.bf16.mxu0 0
    %1213 = vmatpush1.bf16.msra.mxu0 0
    %1214 = vmatprep.subr.bf16.mxu0 0
    %1215 = vmatpush1.bf16.msra.mxu0 0
    %1216 = vmatprep.subr.bf16.mxu0 0
    %1217 = vmatpush1.bf16.msra.mxu0 0
    %1218 = vmatprep.subr.bf16.mxu0 0
    %1219 = vmatpush1.bf16.msra.mxu0 0
    %1220 = vmatprep.subr.bf16.mxu0 0
    %1221 = vmatpush1.bf16.msra.mxu0 0
    %1222 = vmatprep.subr.bf16.mxu0 0
    %1223 = vmatpush1.bf16.msra.mxu0 0
    %1224 = vmatprep.subr.bf16.mxu0 0
    %1225 = vmatpush1.bf16.msra.mxu0 0
    %1226 = vmatprep.subr.bf16.mxu0 0
    %1227 = vmatpush1.bf16.msra.mxu0 0
    %1228 = vmatprep.subr.bf16.mxu0 0
    %1229 = vmatpush1.bf16.msra.mxu0 0
    %1230 = vmatprep.mubr.bf16.mxu0 0
    %1231 = vmatmul.mubr.bf16.gmra.mrb[0].mxu0 %v1196
    %v1232 = vpop.f32.mrb[0].mxu0
    %v1233 = vadd.f32 0.0, %v1232
    %v1234 = vpop.f32.mrb[0].mxu0
    %v1235 = vpop.f32.mrb[0].mxu0
    %v1236 = vadd.f32 0.0, %v1235
    %v1237 = vpop.f32.mrb[0].mxu0
    %1238 = vdwg.mxu0
    %v1239 = vadd.f32 %v1147, %v1233
    %v1240 = vadd.f32 %v1148, %v1236
    %1241 = vset.pattern.permute.xlu0 12
    %1242 = vperm.xlu0 %1241, %v71
    %v1243 = vpop.permute.xlu0 %1242
    %v1246 = vunpack.c.l.s4 839922192
    %v1247 = vunpack.c.0.s8 %v1246
    %v1248 = vlaneseq
    %v1249 = vshrl.u32 %v1248, 7
    %v1250 = vsub.s32 %v1247, %v1249
    %v1251 = vrot.slane %v1243, %v1250
    %1252 = vset.pattern.permute.xlu0 12
    %1253 = vperm.xlu0 %1252, %v72
    %v1254 = vpop.permute.xlu0 %1253
    %v1257 = vunpack.c.l.s4 839922192
    %v1258 = vunpack.c.0.s8 %v1257
    %v1259 = vlaneseq
    %v1260 = vshrl.u32 %v1259, 7
    %v1261 = vsub.s32 %v1258, %v1260
    %v1262 = vrot.slane %v1254, %v1261
    %v1263 = vmul.bf16 %v69, %v1251
    %v1264 = vmul.bf16 %v70, %v1262
    %s1265 = scalar_lea.vmem [#allocation8], 192
    %v1266 = vld [vmem:[%s1265] sm:$0xf]
    %v1267 = vld [vmem:[%s1265 + $0x4] sm:$0xf]
    %v1268 = vld [vmem:[%s1265 + $0x8] sm:$0xf]
    %v1269 = vld [vmem:[%s1265 + $0xc] sm:$0xf]
    %v1272 = vunpack.c.l.b16 %v1263
    %v1273 = vunpack.c.l.b16 %v1264
    %v1274 = vpack.c.b16 %v1273, %v1272
    %v1279 = vunpack.c.l.b16 %v1266
    %v1280 = vunpack.c.l.b16 %v1267
    %v1281 = vunpack.c.l.b16 %v1268
    %v1282 = vunpack.c.l.b16 %v1269
    %v1283 = vpack.c.b16 %v1280, %v1279
    %v1284 = vpack.c.b16 %v1282, %v1281
    %v1288 = vsel %vm182, %v1274, 0
    %1290 = vmatprep.subr.bf16.mxu0 0
    %1291 = vmatpush1.bf16.msra.mxu0 %v1283
    %1292 = vmatprep.subr.bf16.mxu0 0
    %1293 = vmatpush1.bf16.msra.mxu0 %v1284
    %1294 = vmatprep.subr.bf16.mxu0 0
    %1295 = vmatpush1.bf16.msra.mxu0 0
    %1296 = vmatprep.subr.bf16.mxu0 0
    %1297 = vmatpush1.bf16.msra.mxu0 0
    %1298 = vmatprep.subr.bf16.mxu0 0
    %1299 = vmatpush1.bf16.msra.mxu0 0
    %1300 = vmatprep.subr.bf16.mxu0 0
    %1301 = vmatpush1.bf16.msra.mxu0 0
    %1302 = vmatprep.subr.bf16.mxu0 0
    %1303 = vmatpush1.bf16.msra.mxu0 0
    %1304 = vmatprep.subr.bf16.mxu0 0
    %1305 = vmatpush1.bf16.msra.mxu0 0
    %1306 = vmatprep.subr.bf16.mxu0 0
    %1307 = vmatpush1.bf16.msra.mxu0 0
    %1308 = vmatprep.subr.bf16.mxu0 0
    %1309 = vmatpush1.bf16.msra.mxu0 0
    %1310 = vmatprep.subr.bf16.mxu0 0
    %1311 = vmatpush1.bf16.msra.mxu0 0
    %1312 = vmatprep.subr.bf16.mxu0 0
    %1313 = vmatpush1.bf16.msra.mxu0 0
    %1314 = vmatprep.subr.bf16.mxu0 0
    %1315 = vmatpush1.bf16.msra.mxu0 0
    %1316 = vmatprep.subr.bf16.mxu0 0
    %1317 = vmatpush1.bf16.msra.mxu0 0
    %1318 = vmatprep.subr.bf16.mxu0 0
    %1319 = vmatpush1.bf16.msra.mxu0 0
    %1320 = vmatprep.subr.bf16.mxu0 0
    %1321 = vmatpush1.bf16.msra.mxu0 0
    %1322 = vmatprep.mubr.bf16.mxu0 0
    %1323 = vmatmul.mubr.bf16.gmra.mrb[0].mxu0 %v1288
    %v1324 = vpop.f32.mrb[0].mxu0
    %v1325 = vadd.f32 0.0, %v1324
    %v1326 = vpop.f32.mrb[0].mxu0
    %v1327 = vpop.f32.mrb[0].mxu0
    %v1328 = vadd.f32 0.0, %v1327
    %v1329 = vpop.f32.mrb[0].mxu0
    %1330 = vdwg.mxu0
    %v1331 = vadd.f32 %v1239, %v1325
    %v1332 = vadd.f32 %v1240, %v1328
    %1333 = vset.pattern.permute.xlu0 13
    %1334 = vperm.xlu0 %1333, %v71
    %v1335 = vpop.permute.xlu0 %1334
    %v1338 = vunpack.c.l.s4 839922192
    %v1339 = vunpack.c.0.s8 %v1338
    %v1340 = vlaneseq
    %v1341 = vshrl.u32 %v1340, 7
    %v1342 = vsub.s32 %v1339, %v1341
    %v1343 = vrot.slane %v1335, %v1342
    %1344 = vset.pattern.permute.xlu0 13
    %1345 = vperm.xlu0 %1344, %v72
    %v1346 = vpop.permute.xlu0 %1345
    %v1349 = vunpack.c.l.s4 839922192
    %v1350 = vunpack.c.0.s8 %v1349
    %v1351 = vlaneseq
    %v1352 = vshrl.u32 %v1351, 7
    %v1353 = vsub.s32 %v1350, %v1352
    %v1354 = vrot.slane %v1346, %v1353
    %v1355 = vmul.bf16 %v69, %v1343
    %v1356 = vmul.bf16 %v70, %v1354
    %s1357 = scalar_lea.vmem [#allocation8], 208
    %v1358 = vld [vmem:[%s1357] sm:$0xf]
    %v1359 = vld [vmem:[%s1357 + $0x4] sm:$0xf]
    %v1360 = vld [vmem:[%s1357 + $0x8] sm:$0xf]
    %v1361 = vld [vmem:[%s1357 + $0xc] sm:$0xf]
    %v1364 = vunpack.c.l.b16 %v1355
    %v1365 = vunpack.c.l.b16 %v1356
    %v1366 = vpack.c.b16 %v1365, %v1364
    %v1371 = vunpack.c.l.b16 %v1358
    %v1372 = vunpack.c.l.b16 %v1359
    %v1373 = vunpack.c.l.b16 %v1360
    %v1374 = vunpack.c.l.b16 %v1361
    %v1375 = vpack.c.b16 %v1372, %v1371
    %v1376 = vpack.c.b16 %v1374, %v1373
    %v1380 = vsel %vm182, %v1366, 0
    %1382 = vmatprep.subr.bf16.mxu0 0
    %1383 = vmatpush1.bf16.msra.mxu0 %v1375
    %1384 = vmatprep.subr.bf16.mxu0 0
    %1385 = vmatpush1.bf16.msra.mxu0 %v1376
    %1386 = vmatprep.subr.bf16.mxu0 0
    %1387 = vmatpush1.bf16.msra.mxu0 0
    %1388 = vmatprep.subr.bf16.mxu0 0
    %1389 = vmatpush1.bf16.msra.mxu0 0
    %1390 = vmatprep.subr.bf16.mxu0 0
    %1391 = vmatpush1.bf16.msra.mxu0 0
    %1392 = vmatprep.subr.bf16.mxu0 0
    %1393 = vmatpush1.bf16.msra.mxu0 0
    %1394 = vmatprep.subr.bf16.mxu0 0
    %1395 = vmatpush1.bf16.msra.mxu0 0
    %1396 = vmatprep.subr.bf16.mxu0 0
    %1397 = vmatpush1.bf16.msra.mxu0 0
    %1398 = vmatprep.subr.bf16.mxu0 0
    %1399 = vmatpush1.bf16.msra.mxu0 0
    %1400 = vmatprep.subr.bf16.mxu0 0
    %1401 = vmatpush1.bf16.msra.mxu0 0
    %1402 = vmatprep.subr.bf16.mxu0 0
    %1403 = vmatpush1.bf16.msra.mxu0 0
    %1404 = vmatprep.subr.bf16.mxu0 0
    %1405 = vmatpush1.bf16.msra.mxu0 0
    %1406 = vmatprep.subr.bf16.mxu0 0
    %1407 = vmatpush1.bf16.msra.mxu0 0
    %1408 = vmatprep.subr.bf16.mxu0 0
    %1409 = vmatpush1.bf16.msra.mxu0 0
    %1410 = vmatprep.subr.bf16.mxu0 0
    %1411 = vmatpush1.bf16.msra.mxu0 0
    %1412 = vmatprep.subr.bf16.mxu0 0
    %1413 = vmatpush1.bf16.msra.mxu0 0
    %1414 = vmatprep.mubr.bf16.mxu0 0
    %1415 = vmatmul.mubr.bf16.gmra.mrb[0].mxu0 %v1380
    %v1416 = vpop.f32.mrb[0].mxu0
    %v1417 = vadd.f32 0.0, %v1416
    %v1418 = vpop.f32.mrb[0].mxu0
    %v1419 = vpop.f32.mrb[0].mxu0
    %v1420 = vadd.f32 0.0, %v1419
    %v1421 = vpop.f32.mrb[0].mxu0
    %1422 = vdwg.mxu0
    %v1423 = vadd.f32 %v1331, %v1417
    %v1424 = vadd.f32 %v1332, %v1420
    %1425 = vset.pattern.permute.xlu0 14
    %1426 = vperm.xlu0 %1425, %v71
    %v1427 = vpop.permute.xlu0 %1426
    %v1430 = vunpack.c.l.s4 839922192
    %v1431 = vunpack.c.0.s8 %v1430
    %v1432 = vlaneseq
    %v1433 = vshrl.u32 %v1432, 7
    %v1434 = vsub.s32 %v1431, %v1433
    %v1435 = vrot.slane %v1427, %v1434
    %1436 = vset.pattern.permute.xlu0 14
    %1437 = vperm.xlu0 %1436, %v72
    %v1438 = vpop.permute.xlu0 %1437
    %v1441 = vunpack.c.l.s4 839922192
    %v1442 = vunpack.c.0.s8 %v1441
    %v1443 = vlaneseq
    %v1444 = vshrl.u32 %v1443, 7
    %v1445 = vsub.s32 %v1442, %v1444
    %v1446 = vrot.slane %v1438, %v1445
    %v1447 = vmul.bf16 %v69, %v1435
    %v1448 = vmul.bf16 %v70, %v1446
    %s1449 = scalar_lea.vmem [#allocation8], 224
    %v1450 = vld [vmem:[%s1449] sm:$0xf]
    %v1451 = vld [vmem:[%s1449 + $0x4] sm:$0xf]
    %v1452 = vld [vmem:[%s1449 + $0x8] sm:$0xf]
    %v1453 = vld [vmem:[%s1449 + $0xc] sm:$0xf]
    %v1456 = vunpack.c.l.b16 %v1447
    %v1457 = vunpack.c.l.b16 %v1448
    %v1458 = vpack.c.b16 %v1457, %v1456
    %v1463 = vunpack.c.l.b16 %v1450
    %v1464 = vunpack.c.l.b16 %v1451
    %v1465 = vunpack.c.l.b16 %v1452
    %v1466 = vunpack.c.l.b16 %v1453
    %v1467 = vpack.c.b16 %v1464, %v1463
    %v1468 = vpack.c.b16 %v1466, %v1465
    %v1472 = vsel %vm182, %v1458, 0
    %1474 = vmatprep.subr.bf16.mxu0 0
    %1475 = vmatpush1.bf16.msra.mxu0 %v1467
    %1476 = vmatprep.subr.bf16.mxu0 0
    %1477 = vmatpush1.bf16.msra.mxu0 %v1468
    %1478 = vmatprep.subr.bf16.mxu0 0
    %1479 = vmatpush1.bf16.msra.mxu0 0
    %1480 = vmatprep.subr.bf16.mxu0 0
    %1481 = vmatpush1.bf16.msra.mxu0 0
    %1482 = vmatprep.subr.bf16.mxu0 0
    %1483 = vmatpush1.bf16.msra.mxu0 0
    %1484 = vmatprep.subr.bf16.mxu0 0
    %1485 = vmatpush1.bf16.msra.mxu0 0
    %1486 = vmatprep.subr.bf16.mxu0 0
    %1487 = vmatpush1.bf16.msra.mxu0 0
    %1488 = vmatprep.subr.bf16.mxu0 0
    %1489 = vmatpush1.bf16.msra.mxu0 0
    %1490 = vmatprep.subr.bf16.mxu0 0
    %1491 = vmatpush1.bf16.msra.mxu0 0
    %1492 = vmatprep.subr.bf16.mxu0 0
    %1493 = vmatpush1.bf16.msra.mxu0 0
    %1494 = vmatprep.subr.bf16.mxu0 0
    %1495 = vmatpush1.bf16.msra.mxu0 0
    %1496 = vmatprep.subr.bf16.mxu0 0
    %1497 = vmatpush1.bf16.msra.mxu0 0
    %1498 = vmatprep.subr.bf16.mxu0 0
    %1499 = vmatpush1.bf16.msra.mxu0 0
    %1500 = vmatprep.subr.bf16.mxu0 0
    %1501 = vmatpush1.bf16.msra.mxu0 0
    %1502 = vmatprep.subr.bf16.mxu0 0
    %1503 = vmatpush1.bf16.msra.mxu0 0
    %1504 = vmatprep.subr.bf16.mxu0 0
    %1505 = vmatpush1.bf16.msra.mxu0 0
    %1506 = vmatprep.mubr.bf16.mxu0 0
    %1507 = vmatmul.mubr.bf16.gmra.mrb[0].mxu0 %v1472
    %v1508 = vpop.f32.mrb[0].mxu0
    %v1509 = vadd.f32 0.0, %v1508
    %v1510 = vpop.f32.mrb[0].mxu0
    %v1511 = vpop.f32.mrb[0].mxu0
    %v1512 = vadd.f32 0.0, %v1511
    %v1513 = vpop.f32.mrb[0].mxu0
    %1514 = vdwg.mxu0
    %v1515 = vadd.f32 %v1423, %v1509
    %v1516 = vadd.f32 %v1424, %v1512
    %1517 = vset.pattern.permute.xlu0 15
    %1518 = vperm.xlu0 %1517, %v71
    %v1519 = vpop.permute.xlu0 %1518
    %v1522 = vunpack.c.l.s4 839922192
    %v1523 = vunpack.c.0.s8 %v1522
    %v1524 = vlaneseq
    %v1525 = vshrl.u32 %v1524, 7
    %v1526 = vsub.s32 %v1523, %v1525
    %v1527 = vrot.slane %v1519, %v1526
    %1528 = vset.pattern.permute.xlu0 15
    %1529 = vperm.xlu0 %1528, %v72
    %v1530 = vpop.permute.xlu0 %1529
    %v1533 = vunpack.c.l.s4 839922192
    %v1534 = vunpack.c.0.s8 %v1533
    %v1535 = vlaneseq
    %v1536 = vshrl.u32 %v1535, 7
    %v1537 = vsub.s32 %v1534, %v1536
    %v1538 = vrot.slane %v1530, %v1537
    %v1539 = vmul.bf16 %v69, %v1527
    %v1540 = vmul.bf16 %v70, %v1538
    %s1541 = scalar_lea.vmem [#allocation8], 240
    %v1542 = vld [vmem:[%s1541] sm:$0xf]
    %v1543 = vld [vmem:[%s1541 + $0x4] sm:$0xf]
    %v1544 = vld [vmem:[%s1541 + $0x8] sm:$0xf]
    %v1545 = vld [vmem:[%s1541 + $0xc] sm:$0xf]
    %v1548 = vunpack.c.l.b16 %v1539
    %v1549 = vunpack.c.l.b16 %v1540
    %v1550 = vpack.c.b16 %v1549, %v1548
    %v1555 = vunpack.c.l.b16 %v1542
    %v1556 = vunpack.c.l.b16 %v1543
    %v1557 = vunpack.c.l.b16 %v1544
    %v1558 = vunpack.c.l.b16 %v1545
    %v1559 = vpack.c.b16 %v1556, %v1555
    %v1560 = vpack.c.b16 %v1558, %v1557
    %v1564 = vsel %vm182, %v1550, 0
    %1566 = vmatprep.subr.bf16.mxu0 0
    %1567 = vmatpush1.bf16.msra.mxu0 %v1559
    %1568 = vmatprep.subr.bf16.mxu0 0
    %1569 = vmatpush1.bf16.msra.mxu0 %v1560
    %1570 = vmatprep.subr.bf16.mxu0 0
    %1571 = vmatpush1.bf16.msra.mxu0 0
    %1572 = vmatprep.subr.bf16.mxu0 0
    %1573 = vmatpush1.bf16.msra.mxu0 0
    %1574 = vmatprep.subr.bf16.mxu0 0
    %1575 = vmatpush1.bf16.msra.mxu0 0
    %1576 = vmatprep.subr.bf16.mxu0 0
    %1577 = vmatpush1.bf16.msra.mxu0 0
    %1578 = vmatprep.subr.bf16.mxu0 0
    %1579 = vmatpush1.bf16.msra.mxu0 0
    %1580 = vmatprep.subr.bf16.mxu0 0
    %1581 = vmatpush1.bf16.msra.mxu0 0
    %1582 = vmatprep.subr.bf16.mxu0 0
    %1583 = vmatpush1.bf16.msra.mxu0 0
    %1584 = vmatprep.subr.bf16.mxu0 0
    %1585 = vmatpush1.bf16.msra.mxu0 0
    %1586 = vmatprep.subr.bf16.mxu0 0
    %1587 = vmatpush1.bf16.msra.mxu0 0
    %1588 = vmatprep.subr.bf16.mxu0 0
    %1589 = vmatpush1.bf16.msra.mxu0 0
    %1590 = vmatprep.subr.bf16.mxu0 0
    %1591 = vmatpush1.bf16.msra.mxu0 0
    %1592 = vmatprep.subr.bf16.mxu0 0
    %1593 = vmatpush1.bf16.msra.mxu0 0
    %1594 = vmatprep.subr.bf16.mxu0 0
    %1595 = vmatpush1.bf16.msra.mxu0 0
    %1596 = vmatprep.subr.bf16.mxu0 0
    %1597 = vmatpush1.bf16.msra.mxu0 0
    %1598 = vmatprep.mubr.bf16.mxu0 0
    %1599 = vmatmul.mubr.bf16.gmra.mrb[0].mxu0 %v1564
    %v1600 = vpop.f32.mrb[0].mxu0
    %v1601 = vadd.f32 0.0, %v1600
    %v1602 = vpop.f32.mrb[0].mxu0
    %v1603 = vpop.f32.mrb[0].mxu0
    %v1604 = vadd.f32 0.0, %v1603
    %v1605 = vpop.f32.mrb[0].mxu0
    %1606 = vdwg.mxu0
    %v1607 = vadd.f32 %v1515, %v1601
    %v1608 = vadd.f32 %v1516, %v1604
    %1609 = vst [vmem:[#allocation2] sm:$0xff] %v1607
    %1610 = vst [vmem:[#allocation2 + $0x8] sm:$0xff] %v1608
    // Predicated region
    $region38: #{tpu_custom_call.1} parent=1 // pred_check
      %p1611 = pneg %p63
    $region39: #{tpu_custom_call.1} parent=1 // pred_check_branch
      %1613 = sbr.rel (%p1611) target = $region41
    $region40: #{tpu_custom_call.1} parent=1 // pred_region
      %v1614 = vld [vmem:[#allocation2] sm:$0xff]
      %v1615 = vld [vmem:[#allocation2 + $0x8] sm:$0xff]
      %v1616 = vld [vmem:[%s4] sm:$0x1]
      %v1617 = vlaneseq
      %v1618 = vshrl.u32 %v1617, 7
      %v1619 = vsub.s32 0, %v1618
      %v1620 = vrot.slane %v1616, %v1619
      %v1621 = vmul.f32 %v1614, %v1620
      %v1622 = vmul.f32 %v1615, %v1620
      %v1623 = vld [vmem:[%s4 + $0x1] sm:$0x1]
      %v1624 = vlaneseq
      %v1625 = vshrl.u32 %v1624, 7
      %v1626 = vsub.s32 0, %v1625
      %v1627 = vrot.slane %v1623, %v1626
      %v1628 = vadd.f32 %v1621, %v1627
      %v1629 = vadd.f32 %v1622, %v1627
      %1630 = vst [vmem:[#allocation9] sm:$0xff] %v1628
      %1631 = vst [vmem:[#allocation9 + $0x8] sm:$0xff] %v1629
    $region41: #{tpu_custom_call.1} parent=1 // pred_fallthru
      _
    // Predicated region
    $region42: #{tpu_custom_call.1} parent=1 // pred_check
      _
    $region43: #{tpu_custom_call.1} parent=1 // pred_check_branch
      %1633 = sbr.rel (0) target = $region45
    $region44: #{tpu_custom_call.1} parent=1 // pred_region
      %s1635 = ssub.s32 256, 256
      %1636 = vsyncadd [#allocation5], %s1635
      %s1637 = sshll.u32 [#allocation9], 4
      %s1638 = int_to_ptr.vmem [resolvable:$true] %s1637
      %1643 = dma.vmem_to_hbm [thread:$0]  %s1638, 256, %s5, [#allocation5], 128, 128, 8
    $region45: #{tpu_custom_call.1} parent=1 // pred_fallthru
      _
    // Predicated region
    $region46: #{tpu_custom_call.1} parent=1 // pred_check
      _
    $region47: #{tpu_custom_call.1} parent=1 // pred_check_branch
      %1645 = sbr.rel (0) target = $region49
    $region48: #{tpu_custom_call.1} parent=1 // pred_region
      %1646 = dma.done [#allocation5], 256
    $region49: #{tpu_custom_call.1} parent=1 // pred_fallthru
      _
    %1647 = vsyncpa [#allocation4], 1
    %1648 = vsyncpa [#allocation7], 1
    %1649 = vsyncpa [#allocation5], 1

</llo_original>
